<compile_context>
chip_gen: v7x
topology: tpu7x:2x2x1
jax: 0.10.0
libtpu: 0.0.40
codegen_flags: <defaults>
</compile_context>

<pallas_src>
import functools

import jax
import jax.numpy as jnp
from jax.experimental import pallas as pl
from jax.experimental.pallas import tpu as pltpu


def _mhsa_kernel(x_ref, wqkv_ref, bqkv_ref, wmlp_ref, bmlp_ref, o_ref, *,
                 n_heads: int, head_dim: int, dim: int, dim_out_pad: int,
                 seq_len: int, block_b: int, approx_recip: bool):
    """One grid step handles `block_b` batch elements, fully resident in VMEM."""
    H, Hd, D, Dp, N = n_heads, head_dim, dim, dim_out_pad, seq_len
    rows = block_b * N          # fused GEMM M-dim
    G = H * block_b             # batched-attention batch dim (head-major)
    scale = 1.0 / (Hd ** 0.5)
    cdt = wqkv_ref.dtype        # MXU operand dtype (bf16 by default)

    # ---- Fused QKV projection for the whole sub-block: one GEMM + one f32 bias add. ----
    xf = x_ref[...].reshape(rows, D)                                   # leading merge: free
    qkv = jnp.dot(xf, wqkv_ref[...],
                  preferred_element_type=jnp.float32) + bqkv_ref[...]  # (rows, 3D) f32

    # ---- Head-major (G, N, Hd) tensors, built ONCE per grid step (3*H lane slices). ----
    def heads(base):
        parts = [qkv[:, base + h * Hd: base + (h + 1) * Hd].reshape(block_b, N, Hd)
                 for h in range(H)]
        return jnp.stack(parts, axis=0).reshape(G, N, Hd)              # g = h*block_b + b

    q = (heads(0) * scale).astype(cdt)       # fold 1/sqrt(Hd) into q (f32 VPU, then cast)
    k = heads(D).astype(cdt)
    v = heads(2 * D).astype(cdt)

    # ---- Batched scores: contract last dims directly (no explicit k.T). ----
    s = jnp.einsum("gqd,gkd->gqk", q, k,
                   preferred_element_type=jnp.float32)                 # (G, N, N) f32

    # ---- Numerically-stable softmax, all in f32 (v5e-safe). ----
    s = s - jnp.max(s, axis=-1, keepdims=True)
    p = jnp.exp(s)
    denom = jnp.sum(p, axis=-1, keepdims=True)
    if approx_recip:
        p = p * pl.reciprocal(denom, approx=True)   # EUP slot, ~free
    else:
        p = p / denom                               # exact path for validation

    # ---- Batched PV matmul. ----
    pv = jnp.einsum("gqk,gkd->gqd", p.astype(cdt), v,
                    preferred_element_type=jnp.float32)                # (G, N, Hd) f32

    # ---- Output projection with heads contracted directly (no VMEM scratch round-trip):
    #      out[r, o] = sum_h (pv_h[r, :] @ W_mlp_h[:, o]) + b.  wmlp_ref is (H, Hd, Dp). ----
    pv_h = pv.reshape(H, rows, Hd).astype(cdt)                         # leading split: free
    partial = jnp.einsum("hrd,hdo->hro", pv_h, wmlp_ref[...],
                         preferred_element_type=jnp.float32)           # (H, rows, Dp) f32
    out = jnp.sum(partial, axis=0) + bmlp_ref[...]                     # (rows, Dp) f32

    # Lane-dense (Dp = multiple of 128) unmasked store.
    o_ref[...] = out.reshape(block_b, N, Dp).astype(o_ref.dtype)


def _round_up(x: int, m: int) -> int:
    return ((x + m - 1) // m) * m


def _min_grid_steps_for_backend() -> int:
    """Keep >= 2 grid steps on v7x so the 'parallel' axis can shard across its 2 TensorCores."""
    try:
        kind = jax.devices()[0].device_kind.lower()
        if "v7" in kind:
            return 2
    except Exception:
        pass
    return 1


def _default_block_batch(batch: int, cap: int = 32, min_grid_steps: int = 1) -> int:
    """Largest divisor of `batch` <= cap, also keeping at least `min_grid_steps` grid steps."""
    cap = max(1, min(cap, batch // max(1, min_grid_steps)))
    for d in range(min(batch, cap), 0, -1):
        if batch % d == 0:
            return d
    return 1


def multi_head_self_attention(x, w_qkv, b_qkv, w_mlp, b_mlp, *, n_heads: int,
                              compute_dtype=jnp.bfloat16, block_b=None,
                              approx_softmax_recip: bool = True):
    """x: (B, N, D). w_qkv: (3D, D) / w_mlp: (D, D) in PyTorch (out, in) layout."""
    B, N, D = x.shape
    assert D % n_heads == 0, "dim must be divisible by n_heads"
    head_dim = D // n_heads
    Dp = max(_round_up(D, 128), 128)          # lane-dense output width

    if block_b is None:
        block_b = _default_block_batch(B, cap=32,
                                       min_grid_steps=_min_grid_steps_for_backend())
    assert B % block_b == 0

    # Pre-transpose to (in, out) so the kernel does x @ W; biases kept in f32.
    x_c = x.astype(compute_dtype)
    wqkv_t = jnp.asarray(w_qkv).T.astype(compute_dtype)                 # (D, 3D)
    bqkv2 = jnp.asarray(b_qkv).reshape(1, 3 * D).astype(jnp.float32)    # (1, 3D)
    # Output projection: transpose, zero-pad out-columns to Dp (free on MXU, makes the
    # output store lane-dense), then split the input rows per head -> (H, Hd, Dp).
    wmlp_t = jnp.asarray(w_mlp).T.astype(compute_dtype)                 # (D, D)
    wmlp_h = jnp.pad(wmlp_t, ((0, 0), (0, Dp - D))).reshape(n_heads, head_dim, Dp)
    bmlp_p = jnp.pad(jnp.asarray(b_mlp).astype(jnp.float32), (0, Dp - D)).reshape(1, Dp)

    kernel = functools.partial(_mhsa_kernel, n_heads=n_heads, head_dim=head_dim,
                               dim=D, dim_out_pad=Dp, seq_len=N, block_b=block_b,
                               approx_recip=approx_softmax_recip)

    out_pad = pl.pallas_call(
        kernel,
        out_shape=jax.ShapeDtypeStruct((B, N, Dp), x.dtype),
        grid_spec=pltpu.PrefetchScalarGridSpec(
            num_scalar_prefetch=0,
            grid=(B // block_b,),
            in_specs=[
                pl.BlockSpec((block_b, N, D), lambda g: (g, 0, 0)),        # x sub-block
                pl.BlockSpec((D, 3 * D), lambda g: (0, 0)),                # W_qkv^T (resident)
                pl.BlockSpec((1, 3 * D), lambda g: (0, 0)),                # b_qkv
                pl.BlockSpec((n_heads, head_dim, Dp), lambda g: (0, 0, 0)),  # W_mlp^T per-head
                pl.BlockSpec((1, Dp), lambda g: (0, 0)),                   # b_mlp (padded)
            ],
            out_specs=pl.BlockSpec((block_b, N, Dp), lambda g: (g, 0, 0)),
        ),
        compiler_params=pltpu.CompilerParams(
            dimension_semantics=("parallel",)),
    )(x_c, wqkv_t, bqkv2, wmlp_h, bmlp_p)

    return out_pad[..., :D] if Dp != D else out_pad


def _reference(x, w_qkv, b_qkv, w_mlp, b_mlp, n_heads):
    """Plain-JAX re-implementation of the PyTorch forward (eval mode), f32."""
    B, N, D = x.shape
    hd = D // n_heads
    qkv = jnp.einsum("bnd,od->bno", x, w_qkv) + b_qkv                   # (B, N, 3D)
    qkv = qkv.reshape(B, N, 3, n_heads, hd).transpose(2, 0, 3, 1, 4)
    q, k, v = qkv[0], qkv[1], qkv[2]                                    # (B, H, N, Hd)
    s = jnp.einsum("bhqd,bhkd->bhqk", q, k) / (hd ** 0.5)
    p = jax.nn.softmax(s, axis=-1)
    vals = jnp.einsum("bhqk,bhkd->bhqd", p, v)                          # (B, H, N, Hd)
    vals = vals.transpose(0, 2, 1, 3).reshape(B, N, D)
    return jnp.einsum("bnd,od->bno", vals, w_mlp) + b_mlp


if __name__ == "__main__":
    # Small shapes consistent with the module: dim=32, n_heads=4, seq=8, batch=2.
    B, N, D, H = 2, 8, 32, 4

    key = jax.random.PRNGKey(0)
    k_x, k_wq, k_bq, k_wm, k_bm = jax.random.split(key, 5)

    x = jax.random.normal(k_x, (B, N, D), dtype=jnp.float32)
    # nn.Linear(dim, 3*dim, bias=True): weight (3D, D), bias (3D,)
    w_qkv = jax.random.normal(k_wq, (3 * D, D), dtype=jnp.float32) * 0.05
    b_qkv = jax.random.normal(k_bq, (3 * D,), dtype=jnp.float32) * 0.05
    # nn.Linear(dim, dim): weight (D, D), bias (D,)
    w_mlp = jax.random.normal(k_wm, (D, D), dtype=jnp.float32) * 0.05
    b_mlp = jax.random.normal(k_bm, (D,), dtype=jnp.float32) * 0.05

    ref = _reference(x, w_qkv, b_qkv, w_mlp, b_mlp, H)

    # f32 compute path with exact softmax reciprocal: tight numerical check.
    out_f32 = jax.block_until_ready(
        multi_head_self_attention(x, w_qkv, b_qkv, w_mlp, b_mlp, n_heads=H,
                                  compute_dtype=jnp.float32,
                                  approx_softmax_recip=False))
    assert out_f32.shape == (B, N, D)
    assert jnp.allclose(out_f32, ref, atol=1e-3, rtol=1e-3), "f32 kernel mismatch vs reference"

    # Default bf16-operand path (f32 accumulation, approx reciprocal): bf16-level tolerance.
    out_bf16 = jax.block_until_ready(
        multi_head_self_attention(x, w_qkv, b_qkv, w_mlp, b_mlp, n_heads=H))
    assert out_bf16.shape == (B, N, D)
    assert jnp.allclose(out_bf16, ref, atol=2e-2, rtol=2e-2), "bf16 kernel mismatch vs reference"

    print("KERNEL_OK")
</pallas_src>

<mosaic_0001>
module attributes {stable_mosaic.version = 11 : i64} {
  func.func @_mhsa_kernel(%arg0: i32, %arg1: memref<2x8x32xf32, #tpu.memory_space<vmem>>, %arg2: memref<32x96xf32, #tpu.memory_space<vmem>>, %arg3: memref<1x96xf32, #tpu.memory_space<vmem>>, %arg4: memref<4x8x128xf32, #tpu.memory_space<vmem>>, %arg5: memref<1x128xf32, #tpu.memory_space<vmem>>, %arg6: memref<2x8x128xf32, #tpu.memory_space<vmem>>) attributes {dimension_semantics = [#tpu.dimension_semantics<parallel>], iteration_bounds = array<i64: 1>, scalar_prefetch = 0 : i64, scratch_operands = 0 : i64, tpu.core_type = #tpu.core_type<tc>, window_params = [{transform_indices = @transform_0, window_bounds = array<i64: 2, 8, 32>}, {pipeline_mode = #tpu.pipeline_mode<synchronous>, transform_indices = @transform_1, window_bounds = array<i64: 32, 96>}, {pipeline_mode = #tpu.pipeline_mode<synchronous>, transform_indices = @transform_2, window_bounds = array<i64: 1, 96>}, {pipeline_mode = #tpu.pipeline_mode<synchronous>, transform_indices = @transform_3, window_bounds = array<i64: 4, 8, 128>}, {pipeline_mode = #tpu.pipeline_mode<synchronous>, transform_indices = @transform_4, window_bounds = array<i64: 1, 128>}, {transform_indices = @transform_5, window_bounds = array<i64: 2, 8, 128>}]} {
    %c0 = arith.constant 0 : index
    %c0_0 = arith.constant 0 : index
    %c0_1 = arith.constant 0 : index
    %0 = vector.load %arg1[%c0, %c0_0, %c0_1] : memref<2x8x32xf32, #tpu.memory_space<vmem>>, vector<2x8x32xf32>
    %1 = vector.shape_cast %0 : vector<2x8x32xf32> to vector<16x32xf32>
    %c0_2 = arith.constant 0 : index
    %c0_3 = arith.constant 0 : index
    %2 = vector.load %arg2[%c0_2, %c0_3] : memref<32x96xf32, #tpu.memory_space<vmem>>, vector<32x96xf32>
    %cst = arith.constant dense<0.000000e+00> : vector<16x96xf32>
    %3 = tpu.matmul %1, %2, %cst {dimension_numbers = #tpu.dot_dimension_numbers<[1], [0], [0], [1], [0, 0, 1, 1], [], []>} : vector<16x32xf32>, vector<32x96xf32>, vector<16x96xf32> -> vector<16x96xf32>
    %c0_4 = arith.constant 0 : index
    %c0_5 = arith.constant 0 : index
    %4 = vector.load %arg3[%c0_4, %c0_5] : memref<1x96xf32, #tpu.memory_space<vmem>>, vector<1x96xf32>
    %5 = vector.broadcast %4 : vector<1x96xf32> to vector<16x96xf32>
    %6 = arith.addf %3, %5 : vector<16x96xf32>
    %7 = vector.extract_strided_slice %6 {offsets = [0, 0], sizes = [16, 8], strides = [1, 1]} : vector<16x96xf32> to vector<16x8xf32>
    %8 = vector.shape_cast %7 : vector<16x8xf32> to vector<2x8x8xf32>
    %9 = vector.extract_strided_slice %6 {offsets = [0, 8], sizes = [16, 8], strides = [1, 1]} : vector<16x96xf32> to vector<16x8xf32>
    %10 = vector.shape_cast %9 : vector<16x8xf32> to vector<2x8x8xf32>
    %11 = vector.extract_strided_slice %6 {offsets = [0, 16], sizes = [16, 8], strides = [1, 1]} : vector<16x96xf32> to vector<16x8xf32>
    %12 = vector.shape_cast %11 : vector<16x8xf32> to vector<2x8x8xf32>
    %13 = vector.extract_strided_slice %6 {offsets = [0, 24], sizes = [16, 8], strides = [1, 1]} : vector<16x96xf32> to vector<16x8xf32>
    %14 = vector.shape_cast %13 : vector<16x8xf32> to vector<2x8x8xf32>
    %15 = vector.shape_cast %8 : vector<2x8x8xf32> to vector<1x2x8x8xf32>
    %16 = vector.shape_cast %10 : vector<2x8x8xf32> to vector<1x2x8x8xf32>
    %17 = vector.shape_cast %12 : vector<2x8x8xf32> to vector<1x2x8x8xf32>
    %18 = vector.shape_cast %14 : vector<2x8x8xf32> to vector<1x2x8x8xf32>
    %19 = tpu.concatenate %15, %16, %17, %18 in 0 : vector<1x2x8x8xf32>, vector<1x2x8x8xf32>, vector<1x2x8x8xf32>, vector<1x2x8x8xf32> -> vector<4x2x8x8xf32>
    %20 = vector.shape_cast %19 : vector<4x2x8x8xf32> to vector<8x8x8xf32>
    %cst_6 = arith.constant 0.353553385 : f32
    %21 = vector.broadcast %cst_6 : f32 to vector<8x8x8xf32>
    %22 = arith.mulf %20, %21 : vector<8x8x8xf32>
    %23 = vector.extract_strided_slice %6 {offsets = [0, 32], sizes = [16, 8], strides = [1, 1]} : vector<16x96xf32> to vector<16x8xf32>
    %24 = vector.shape_cast %23 : vector<16x8xf32> to vector<2x8x8xf32>
    %25 = vector.extract_strided_slice %6 {offsets = [0, 40], sizes = [16, 8], strides = [1, 1]} : vector<16x96xf32> to vector<16x8xf32>
    %26 = vector.shape_cast %25 : vector<16x8xf32> to vector<2x8x8xf32>
    %27 = vector.extract_strided_slice %6 {offsets = [0, 48], sizes = [16, 8], strides = [1, 1]} : vector<16x96xf32> to vector<16x8xf32>
    %28 = vector.shape_cast %27 : vector<16x8xf32> to vector<2x8x8xf32>
    %29 = vector.extract_strided_slice %6 {offsets = [0, 56], sizes = [16, 8], strides = [1, 1]} : vector<16x96xf32> to vector<16x8xf32>
    %30 = vector.shape_cast %29 : vector<16x8xf32> to vector<2x8x8xf32>
    %31 = vector.shape_cast %24 : vector<2x8x8xf32> to vector<1x2x8x8xf32>
    %32 = vector.shape_cast %26 : vector<2x8x8xf32> to vector<1x2x8x8xf32>
    %33 = vector.shape_cast %28 : vector<2x8x8xf32> to vector<1x2x8x8xf32>
    %34 = vector.shape_cast %30 : vector<2x8x8xf32> to vector<1x2x8x8xf32>
    %35 = tpu.concatenate %31, %32, %33, %34 in 0 : vector<1x2x8x8xf32>, vector<1x2x8x8xf32>, vector<1x2x8x8xf32>, vector<1x2x8x8xf32> -> vector<4x2x8x8xf32>
    %36 = vector.shape_cast %35 : vector<4x2x8x8xf32> to vector<8x8x8xf32>
    %37 = vector.extract_strided_slice %6 {offsets = [0, 64], sizes = [16, 8], strides = [1, 1]} : vector<16x96xf32> to vector<16x8xf32>
    %38 = vector.shape_cast %37 : vector<16x8xf32> to vector<2x8x8xf32>
    %39 = vector.extract_strided_slice %6 {offsets = [0, 72], sizes = [16, 8], strides = [1, 1]} : vector<16x96xf32> to vector<16x8xf32>
    %40 = vector.shape_cast %39 : vector<16x8xf32> to vector<2x8x8xf32>
    %41 = vector.extract_strided_slice %6 {offsets = [0, 80], sizes = [16, 8], strides = [1, 1]} : vector<16x96xf32> to vector<16x8xf32>
    %42 = vector.shape_cast %41 : vector<16x8xf32> to vector<2x8x8xf32>
    %43 = vector.extract_strided_slice %6 {offsets = [0, 88], sizes = [16, 8], strides = [1, 1]} : vector<16x96xf32> to vector<16x8xf32>
    %44 = vector.shape_cast %43 : vector<16x8xf32> to vector<2x8x8xf32>
    %45 = vector.shape_cast %38 : vector<2x8x8xf32> to vector<1x2x8x8xf32>
    %46 = vector.shape_cast %40 : vector<2x8x8xf32> to vector<1x2x8x8xf32>
    %47 = vector.shape_cast %42 : vector<2x8x8xf32> to vector<1x2x8x8xf32>
    %48 = vector.shape_cast %44 : vector<2x8x8xf32> to vector<1x2x8x8xf32>
    %49 = tpu.concatenate %45, %46, %47, %48 in 0 : vector<1x2x8x8xf32>, vector<1x2x8x8xf32>, vector<1x2x8x8xf32>, vector<1x2x8x8xf32> -> vector<4x2x8x8xf32>
    %50 = vector.shape_cast %49 : vector<4x2x8x8xf32> to vector<8x8x8xf32>
    "tpu.trace_start"() <{level = 10 : i32, message = "gqd,gkd->gqk"}> : () -> ()
    %cst_7 = arith.constant dense<0.000000e+00> : vector<8x8x8xf32>
    %51 = tpu.matmul %22, %36, %cst_7 {dimension_numbers = #tpu.dot_dimension_numbers<[2], [2], [1], [1], [0, 0, 0, 1, 1, 1], [0], [0]>} : vector<8x8x8xf32>, vector<8x8x8xf32>, vector<8x8x8xf32> -> vector<8x8x8xf32>
    "tpu.trace_stop"() : () -> ()
    %cst_8 = arith.constant dense<0xFF800000> : vector<8x8xf32>
    %52 = vector.multi_reduction <maximumf>, %51, %cst_8 [2] : vector<8x8x8xf32> to vector<8x8xf32>
    %53 = vector.shape_cast %52 : vector<8x8xf32> to vector<8x8x1xf32>
    %54 = vector.broadcast %53 : vector<8x8x1xf32> to vector<8x8x8xf32>
    %55 = arith.subf %51, %54 : vector<8x8x8xf32>
    %56 = math.exp %55 : vector<8x8x8xf32>
    %cst_9 = arith.constant dense<0.000000e+00> : vector<8x8xf32>
    %57 = vector.multi_reduction <add>, %56, %cst_9 [2] : vector<8x8x8xf32> to vector<8x8xf32>
    %58 = vector.shape_cast %57 : vector<8x8xf32> to vector<8x8x1xf32>
    %59 = vector.broadcast %58 : vector<8x8x1xf32> to vector<8x8x8xf32>
    %60 = arith.divf %56, %59 : vector<8x8x8xf32>
    "tpu.trace_start"() <{level = 10 : i32, message = "gqk,gkd->gqd"}> : () -> ()
    %cst_10 = arith.constant dense<0.000000e+00> : vector<8x8x8xf32>
    %61 = tpu.matmul %60, %50, %cst_10 {dimension_numbers = #tpu.dot_dimension_numbers<[2], [1], [1], [2], [0, 0, 0, 1, 1, 2], [0], [0]>} : vector<8x8x8xf32>, vector<8x8x8xf32>, vector<8x8x8xf32> -> vector<8x8x8xf32>
    "tpu.trace_stop"() : () -> ()
    %62 = vector.shape_cast %61 : vector<8x8x8xf32> to vector<4x16x8xf32>
    %c0_11 = arith.constant 0 : index
    %c0_12 = arith.constant 0 : index
    %c0_13 = arith.constant 0 : index
    %63 = vector.load %arg4[%c0_11, %c0_12, %c0_13] : memref<4x8x128xf32, #tpu.memory_space<vmem>>, vector<4x8x128xf32>
    "tpu.trace_start"() <{level = 10 : i32, message = "hrd,hdo->hro"}> : () -> ()
    %cst_14 = arith.constant dense<0.000000e+00> : vector<4x16x128xf32>
    %64 = tpu.matmul %62, %63, %cst_14 {dimension_numbers = #tpu.dot_dimension_numbers<[2], [1], [1], [2], [0, 0, 0, 1, 1, 2], [0], [0]>} : vector<4x16x8xf32>, vector<4x8x128xf32>, vector<4x16x128xf32> -> vector<4x16x128xf32>
    "tpu.trace_stop"() : () -> ()
    %cst_15 = arith.constant dense<0.000000e+00> : vector<16x128xf32>
    %65 = vector.multi_reduction <add>, %64, %cst_15 [0] : vector<4x16x128xf32> to vector<16x128xf32>
    %c0_16 = arith.constant 0 : index
    %c0_17 = arith.constant 0 : index
    %66 = vector.load %arg5[%c0_16, %c0_17] : memref<1x128xf32, #tpu.memory_space<vmem>>, vector<1x128xf32>
    %67 = vector.broadcast %66 : vector<1x128xf32> to vector<16x128xf32>
    %68 = arith.addf %65, %67 : vector<16x128xf32>
    %69 = vector.shape_cast %68 : vector<16x128xf32> to vector<2x8x128xf32>
    %c0_18 = arith.constant 0 : index
    %c0_19 = arith.constant 0 : index
    %c0_20 = arith.constant 0 : index
    %70 = vector.load %arg6[%c0_18, %c0_19, %c0_20] : memref<2x8x128xf32, #tpu.memory_space<vmem>>, vector<2x8x128xf32>
    tpu.vector_store %arg6[%c0_18, %c0_19, %c0_20], %69 {strides = array<i32>} : memref<2x8x128xf32, #tpu.memory_space<vmem>>, vector<2x8x128xf32>,
    return
  }
  func.func @transform_0(%arg0: i32) -> (i32, i32, i32) {
    %c0_i32 = arith.constant 0 : i32
    %c0_i32_0 = arith.constant 0 : i32
    %c0_i32_1 = arith.constant 0 : i32
    return %arg0, %c0_i32, %c0_i32_0 : i32, i32, i32
  }
  func.func @transform_1(%arg0: i32) -> (i32, i32) {
    %c0_i32 = arith.constant 0 : i32
    %c0_i32_0 = arith.constant 0 : i32
    %c0_i32_1 = arith.constant 0 : i32
    return %c0_i32, %c0_i32_0 : i32, i32
  }
  func.func @transform_2(%arg0: i32) -> (i32, i32) {
    %c0_i32 = arith.constant 0 : i32
    %c0_i32_0 = arith.constant 0 : i32
    %c0_i32_1 = arith.constant 0 : i32
    return %c0_i32, %c0_i32_0 : i32, i32
  }
  func.func @transform_3(%arg0: i32) -> (i32, i32, i32) {
    %c0_i32 = arith.constant 0 : i32
    %c0_i32_0 = arith.constant 0 : i32
    %c0_i32_1 = arith.constant 0 : i32
    %c0_i32_2 = arith.constant 0 : i32
    return %c0_i32, %c0_i32_0, %c0_i32_1 : i32, i32, i32
  }
  func.func @transform_4(%arg0: i32) -> (i32, i32) {
    %c0_i32 = arith.constant 0 : i32
    %c0_i32_0 = arith.constant 0 : i32
    %c0_i32_1 = arith.constant 0 : i32
    return %c0_i32, %c0_i32_0 : i32, i32
  }
  func.func @transform_5(%arg0: i32) -> (i32, i32, i32) {
    %c0_i32 = arith.constant 0 : i32
    %c0_i32_0 = arith.constant 0 : i32
    %c0_i32_1 = arith.constant 0 : i32
    return %arg0, %c0_i32, %c0_i32_0 : i32, i32, i32
  }
}

</mosaic_0001>

<llo_original>
// kernel: tpu_custom_call.1
$region0: #{tpu_custom_call.1}
  #allocation0 [shape = 'u32[]', space=smem, size = 0x4, offset = 0x4, fixed_abs, tag = 'smem constant byte address 0x4 - core index']
  #allocation1 [shape = 'u32[144,128]{1,0:T(1,128)}', space=vmem, size = 0x12000, scoped, tag = 'internal scratch']
  %s0 = inlined_call_operand.hbm [shape: f32[2,8,32], index: 0, kind: input, shape index: {}]
  %s1 = inlined_call_operand.hbm [shape: f32[32,96], index: 1, kind: input, shape index: {}]
  %s2 = inlined_call_operand.vmem [shape: f32[1,96], index: 2, kind: input, shape index: {}]
  %s3 = inlined_call_operand.hbm [shape: f32[4,8,128], index: 3, kind: input, shape index: {}]
  %s4 = inlined_call_operand.vmem [shape: f32[1,128], index: 4, kind: input, shape index: {}]
  %s5 = inlined_call_operand.hbm [shape: f32[2,8,128], index: 5, kind: output, shape index: {}]
  %s6 = sld [smem:[#allocation0]]
  $region42: #{tpu_custom_call.1} parent=0
    _
  %s8 = ssub.s32 1, %s6
  %s9 = scalar_select 0, %s8, %s6
  $region1: #{tpu_custom_call.1} parent=0
    #allocation2 [shape = 'u8[8192]{0}', space=vmem, size = 0x2000, scoped, tag = 'input window, operand 0, single buffered']
    #allocation3 [shape = 's32[1]{0}', space=sflag, size = 0x4, scoped, tag = 'scoped memory for tpu_custom_call.1']
    #allocation4 [shape = 's32[1]{0}', space=sflag, size = 0x4, scoped, tag = 'scoped memory for tpu_custom_call.1']
    #allocation5 [shape = 'u8[16384]{0}', space=vmem, size = 0x4000, scoped, tag = 'input window, operand 1, single buffered']
    #allocation6 [shape = 's32[1]{0}', space=sflag, size = 0x4, scoped, tag = 'scoped memory for tpu_custom_call.1']
    #allocation7 [shape = 'u8[16384]{0}', space=vmem, size = 0x4000, scoped, tag = 'input window, operand 3, single buffered']
    #allocation8 [shape = 'u8[8192]{0}', space=vmem, size = 0x2000, scoped, tag = 'output window, operand 0, single buffered']
    %10 = vsyncpa [#allocation3], 0
    %11 = vsyncpa [#allocation6], 0
    %12 = vsyncpa [#allocation4], 0
    // Predicated region
    $region2: #{tpu_custom_call.1} parent=1 // pred_check
      _
    $region3: #{tpu_custom_call.1} parent=1 // pred_check_branch
      %14 = sbr.rel (0) target = $region5
    $region4: #{tpu_custom_call.1} parent=1 // pred_region
      %s16 = ssub.s32 256, 256
      %17 = vsyncadd [#allocation3], %s16
      %s18 = sshll.u32 [#allocation2], 4
      %s19 = int_to_ptr.vmem [resolvable:$true] %s18
      %24 = dma.hbm_to_vmem [thread:$0]  %s0, 256, %s19, [#allocation3], 128, 128, 8
    $region5: #{tpu_custom_call.1} parent=1 // pred_fallthru
      _
    // Predicated region
    $region6: #{tpu_custom_call.1} parent=1 // pred_check
      _
    $region7: #{tpu_custom_call.1} parent=1 // pred_check_branch
      %26 = sbr.rel (0) target = $region9
    $region8: #{tpu_custom_call.1} parent=1 // pred_region
      %s28 = ssub.s32 512, 512
      %29 = vsyncadd [#allocation6], %s28
      %s30 = sshll.u32 [#allocation5], 4
      %s31 = int_to_ptr.vmem [resolvable:$true] %s30
      %36 = dma.hbm_to_vmem [thread:$0]  %s1, 512, %s31, [#allocation6], 128, 128, 8
    $region9: #{tpu_custom_call.1} parent=1 // pred_fallthru
      _
    // Predicated region
    $region10: #{tpu_custom_call.1} parent=1 // pred_check
      _
    $region11: #{tpu_custom_call.1} parent=1 // pred_check_branch
      %38 = sbr.rel (0) target = $region13
    $region12: #{tpu_custom_call.1} parent=1 // pred_region
      _
    $region13: #{tpu_custom_call.1} parent=1 // pred_fallthru
      _
    // Predicated region
    $region14: #{tpu_custom_call.1} parent=1 // pred_check
      _
    $region15: #{tpu_custom_call.1} parent=1 // pred_check_branch
      %40 = sbr.rel (0) target = $region17
    $region16: #{tpu_custom_call.1} parent=1 // pred_region
      %s42 = ssub.s32 512, 512
      %43 = vsyncadd [#allocation6], %s42
      %s44 = sshll.u32 [#allocation7], 4
      %s45 = int_to_ptr.vmem [resolvable:$true] %s44
      %50 = dma.hbm_to_vmem [thread:$0]  %s3, 512, %s45, [#allocation6], 128, 128, 8
    $region17: #{tpu_custom_call.1} parent=1 // pred_fallthru
      _
    // Predicated region
    $region18: #{tpu_custom_call.1} parent=1 // pred_check
      _
    $region19: #{tpu_custom_call.1} parent=1 // pred_check_branch
      %52 = sbr.rel (0) target = $region21
    $region20: #{tpu_custom_call.1} parent=1 // pred_region
      _
    $region21: #{tpu_custom_call.1} parent=1 // pred_fallthru
      _
    // Predicated region
    $region22: #{tpu_custom_call.1} parent=1 // pred_check
      _
    $region23: #{tpu_custom_call.1} parent=1 // pred_check_branch
      %54 = sbr.rel (0) target = $region25
    $region24: #{tpu_custom_call.1} parent=1 // pred_region
      %55 = dma.done [#allocation3], 256
    $region25: #{tpu_custom_call.1} parent=1 // pred_fallthru
      _
    // Predicated region
    $region26: #{tpu_custom_call.1} parent=1 // pred_check
      _
    $region27: #{tpu_custom_call.1} parent=1 // pred_check_branch
      %57 = sbr.rel (0) target = $region29
    $region28: #{tpu_custom_call.1} parent=1 // pred_region
      %58 = dma.done [#allocation6], 512
    $region29: #{tpu_custom_call.1} parent=1 // pred_fallthru
      _
    // Predicated region
    $region30: #{tpu_custom_call.1} parent=1 // pred_check
      _
    $region31: #{tpu_custom_call.1} parent=1 // pred_check_branch
      %60 = sbr.rel (0) target = $region33
    $region32: #{tpu_custom_call.1} parent=1 // pred_region
      %61 = dma.done [#allocation6], 512
    $region33: #{tpu_custom_call.1} parent=1 // pred_fallthru
      _
    %v62 = vld [vmem:[#allocation2] sm:$0xff]
    %v63 = vld [vmem:[#allocation2 + $0x8] sm:$0xff]
    %v64 = vld [vmem:[#allocation5] sm:$0xff]
    %v65 = vld [vmem:[#allocation5 + $0x8] sm:$0xff]
    %v66 = vld [vmem:[#allocation5 + $0x10] sm:$0xff]
    %v67 = vld [vmem:[#allocation5 + $0x18] sm:$0xff]
    %v68 = vld [vmem:[%s2] sm:$0x1]
    %v70 = vlaneseq
    %v71 = vshrl.u32 %v70, 7
    %v72 = vsub.s32 0, %v71
    %v73 = vrot.slane %v68, %v72
    %vm75 = vcmask 261120
    %v77 = vsel %vm75, %v62, 0
    %v80 = vsel %vm75, %v63, 0
    %82 = vmatprep.subr.mxu0 0.0
    %83 = vmatpush1.msra.mxu0 %v64
    %84 = vmatprep.subr.mxu0 0.0
    %85 = vmatpush1.msra.mxu0 %v65
    %86 = vmatprep.subr.mxu0 0.0
    %87 = vmatpush1.msra.mxu0 %v66
    %88 = vmatprep.subr.mxu0 0.0
    %89 = vmatpush1.msra.mxu0 %v67
    %90 = vmatprep.subr.mxu0 0.0
    %91 = vmatpush1.msra.mxu0 0.0
    %92 = vmatprep.subr.mxu0 0.0
    %93 = vmatpush1.msra.mxu0 0.0
    %94 = vmatprep.subr.mxu0 0.0
    %95 = vmatpush1.msra.mxu0 0.0
    %96 = vmatprep.subr.mxu0 0.0
    %97 = vmatpush1.msra.mxu0 0.0
    %98 = vmatprep.subr.mxu0 0.0
    %99 = vmatpush1.msra.mxu0 0.0
    %100 = vmatprep.subr.mxu0 0.0
    %101 = vmatpush1.msra.mxu0 0.0
    %102 = vmatprep.subr.mxu0 0.0
    %103 = vmatpush1.msra.mxu0 0.0
    %104 = vmatprep.subr.mxu0 0.0
    %105 = vmatpush1.msra.mxu0 0.0
    %106 = vmatprep.subr.mxu0 0.0
    %107 = vmatpush1.msra.mxu0 0.0
    %108 = vmatprep.subr.mxu0 0.0
    %109 = vmatpush1.msra.mxu0 0.0
    %110 = vmatprep.subr.mxu0 0.0
    %111 = vmatpush1.msra.mxu0 0.0
    %112 = vmatprep.subr.mxu0 0.0
    %113 = vmatpush1.msra.mxu0 0.0
    %114 = vmatprep.subr.mxu0 0.0
    %115 = vmatpush1.msra.mxu0 0.0
    %116 = vmatprep.subr.mxu0 0.0
    %117 = vmatpush1.msra.mxu0 0.0
    %118 = vmatprep.subr.mxu0 0.0
    %119 = vmatpush1.msra.mxu0 0.0
    %120 = vmatprep.subr.mxu0 0.0
    %121 = vmatpush1.msra.mxu0 0.0
    %122 = vmatprep.subr.mxu0 0.0
    %123 = vmatpush1.msra.mxu0 0.0
    %124 = vmatprep.subr.mxu0 0.0
    %125 = vmatpush1.msra.mxu0 0.0
    %126 = vmatprep.subr.mxu0 0.0
    %127 = vmatpush1.msra.mxu0 0.0
    %128 = vmatprep.subr.mxu0 0.0
    %129 = vmatpush1.msra.mxu0 0.0
    %130 = vmatprep.subr.mxu0 0.0
    %131 = vmatpush1.msra.mxu0 0.0
    %132 = vmatprep.subr.mxu0 0.0
    %133 = vmatpush1.msra.mxu0 0.0
    %134 = vmatprep.subr.mxu0 0.0
    %135 = vmatpush1.msra.mxu0 0.0
    %136 = vmatprep.subr.mxu0 0.0
    %137 = vmatpush1.msra.mxu0 0.0
    %138 = vmatprep.subr.mxu0 0.0
    %139 = vmatpush1.msra.mxu0 0.0
    %140 = vmatprep.subr.mxu0 0.0
    %141 = vmatpush1.msra.mxu0 0.0
    %142 = vmatprep.subr.mxu0 0.0
    %143 = vmatpush1.msra.mxu0 0.0
    %144 = vmatprep.subr.mxu0 0.0
    %145 = vmatpush1.msra.mxu0 0.0
    %146 = vmatprep.mubr.f32.mxu0 0.0
    %147 = vmatmul.mubr.f32.gmra.mrb[0].mxu0 %v77
    %v148 = vpop.f32.mrb[0].mxu0
    %v149 = vadd.f32 %v73, %v148
    %v150 = vpop.f32.mrb[0].mxu0
    %151 = vmatprep.mubr.f32.mxu0 0.0
    %152 = vmatmul.mubr.f32.gmra.mrb[0].mxu0 %v80
    %v153 = vpop.f32.mrb[0].mxu0
    %v154 = vadd.f32 %v73, %v153
    %v155 = vpop.f32.mrb[0].mxu0
    %156 = vdwg.mxu0
    %159 = vrot.lane.b32.xlu0 %v149, 120
    %v160 = vpop.permute.xlu0 %159
    %161 = vrot.lane.b32.xlu0 %v154, 120
    %v162 = vpop.permute.xlu0 %161
    %165 = vrot.lane.b32.xlu0 %v149, 112
    %v166 = vpop.permute.xlu0 %165
    %167 = vrot.lane.b32.xlu0 %v154, 112
    %v168 = vpop.permute.xlu0 %167
    %171 = vrot.lane.b32.xlu0 %v149, 104
    %v172 = vpop.permute.xlu0 %171
    %173 = vrot.lane.b32.xlu0 %v154, 104
    %v174 = vpop.permute.xlu0 %173
    %v177 = vmul.f32 %v149, 0.35355338
    %v178 = vmul.f32 %v154, 0.35355338
    %v179 = vmul.f32 %v160, 0.35355338
    %v180 = vmul.f32 %v162, 0.35355338
    %v181 = vmul.f32 %v166, 0.35355338
    %v182 = vmul.f32 %v168, 0.35355338
    %v183 = vmul.f32 %v172, 0.35355338
    %v184 = vmul.f32 %v174, 0.35355338
    %185 = vrot.lane.b32.xlu0 %v149, 96
    %v186 = vpop.permute.xlu0 %185
    %vm187 = vcmask 64512
    %v189 = vsel %vm187, %v177, 0
    %v191 = vsel %vm187, %v186, 0
    %193 = vmatprep.subr.mxu0 0.0
    %194 = vmatpush1.xpose.msra.mxu0 %v191
    %195 = vmatprep.subr.mxu0 0.0
    %196 = vmatpush1.xpose.msra.mxu0 0.0
    %197 = vmatprep.subr.mxu0 0.0
    %198 = vmatpush1.xpose.msra.mxu0 0.0
    %199 = vmatprep.subr.mxu0 0.0
    %200 = vmatpush1.xpose.msra.mxu0 0.0
    %201 = vmatprep.subr.mxu0 0.0
    %202 = vmatpush1.xpose.msra.mxu0 0.0
    %203 = vmatprep.subr.mxu0 0.0
    %204 = vmatpush1.xpose.msra.mxu0 0.0
    %205 = vmatprep.subr.mxu0 0.0
    %206 = vmatpush1.xpose.msra.mxu0 0.0
    %207 = vmatprep.subr.mxu0 0.0
    %208 = vmatpush1.xpose.msra.mxu0 0.0
    %209 = vmatprep.subr.mxu0 0.0
    %210 = vmatpush1.xpose.msra.mxu0 0.0
    %211 = vmatprep.subr.mxu0 0.0
    %212 = vmatpush1.xpose.msra.mxu0 0.0
    %213 = vmatprep.subr.mxu0 0.0
    %214 = vmatpush1.xpose.msra.mxu0 0.0
    %215 = vmatprep.subr.mxu0 0.0
    %216 = vmatpush1.xpose.msra.mxu0 0.0
    %217 = vmatprep.subr.mxu0 0.0
    %218 = vmatpush1.xpose.msra.mxu0 0.0
    %219 = vmatprep.subr.mxu0 0.0
    %220 = vmatpush1.xpose.msra.mxu0 0.0
    %221 = vmatprep.subr.mxu0 0.0
    %222 = vmatpush1.xpose.msra.mxu0 0.0
    %223 = vmatprep.subr.mxu0 0.0
    %224 = vmatpush1.xpose.msra.mxu0 0.0
    %225 = vmatprep.subr.mxu0 0.0
    %226 = vmatpush1.xpose.msra.mxu0 0.0
    %227 = vmatprep.subr.mxu0 0.0
    %228 = vmatpush1.xpose.msra.mxu0 0.0
    %229 = vmatprep.subr.mxu0 0.0
    %230 = vmatpush1.xpose.msra.mxu0 0.0
    %231 = vmatprep.subr.mxu0 0.0
    %232 = vmatpush1.xpose.msra.mxu0 0.0
    %233 = vmatprep.subr.mxu0 0.0
    %234 = vmatpush1.xpose.msra.mxu0 0.0
    %235 = vmatprep.subr.mxu0 0.0
    %236 = vmatpush1.xpose.msra.mxu0 0.0
    %237 = vmatprep.subr.mxu0 0.0
    %238 = vmatpush1.xpose.msra.mxu0 0.0
    %239 = vmatprep.subr.mxu0 0.0
    %240 = vmatpush1.xpose.msra.mxu0 0.0
    %241 = vmatprep.subr.mxu0 0.0
    %242 = vmatpush1.xpose.msra.mxu0 0.0
    %243 = vmatprep.subr.mxu0 0.0
    %244 = vmatpush1.xpose.msra.mxu0 0.0
    %245 = vmatprep.subr.mxu0 0.0
    %246 = vmatpush1.xpose.msra.mxu0 0.0
    %247 = vmatprep.subr.mxu0 0.0
    %248 = vmatpush1.xpose.msra.mxu0 0.0
    %249 = vmatprep.subr.mxu0 0.0
    %250 = vmatpush1.xpose.msra.mxu0 0.0
    %251 = vmatprep.subr.mxu0 0.0
    %252 = vmatpush1.xpose.msra.mxu0 0.0
    %253 = vmatprep.subr.mxu0 0.0
    %254 = vmatpush1.xpose.msra.mxu0 0.0
    %255 = vmatprep.subr.mxu0 0.0
    %256 = vmatpush1.xpose.msra.mxu0 0.0
    %257 = vmatprep.mubr.f32.mxu0 0.0
    %258 = vmatmul.mubr.f32.gmra.mrb[0].mxu0 %v189
    %v259 = vpop.f32.mrb[0].mxu0
    %v260 = vadd.f32 0.0, %v259
    %v261 = vpop.f32.mrb[0].mxu0
    %262 = vdwg.mxu0
    %263 = vrot.lane.b32.xlu0 %v154, 96
    %v264 = vpop.permute.xlu0 %263
    %v266 = vsel %vm187, %v178, 0
    %v268 = vsel %vm187, %v264, 0
    %270 = vmatprep.subr.mxu0 0.0
    %271 = vmatpush1.xpose.msra.mxu0 %v268
    %272 = vmatprep.subr.mxu0 0.0
    %273 = vmatpush1.xpose.msra.mxu0 0.0
    %274 = vmatprep.subr.mxu0 0.0
    %275 = vmatpush1.xpose.msra.mxu0 0.0
    %276 = vmatprep.subr.mxu0 0.0
    %277 = vmatpush1.xpose.msra.mxu0 0.0
    %278 = vmatprep.subr.mxu0 0.0
    %279 = vmatpush1.xpose.msra.mxu0 0.0
    %280 = vmatprep.subr.mxu0 0.0
    %281 = vmatpush1.xpose.msra.mxu0 0.0
    %282 = vmatprep.subr.mxu0 0.0
    %283 = vmatpush1.xpose.msra.mxu0 0.0
    %284 = vmatprep.subr.mxu0 0.0
    %285 = vmatpush1.xpose.msra.mxu0 0.0
    %286 = vmatprep.subr.mxu0 0.0
    %287 = vmatpush1.xpose.msra.mxu0 0.0
    %288 = vmatprep.subr.mxu0 0.0
    %289 = vmatpush1.xpose.msra.mxu0 0.0
    %290 = vmatprep.subr.mxu0 0.0
    %291 = vmatpush1.xpose.msra.mxu0 0.0
    %292 = vmatprep.subr.mxu0 0.0
    %293 = vmatpush1.xpose.msra.mxu0 0.0
    %294 = vmatprep.subr.mxu0 0.0
    %295 = vmatpush1.xpose.msra.mxu0 0.0
    %296 = vmatprep.subr.mxu0 0.0
    %297 = vmatpush1.xpose.msra.mxu0 0.0
    %298 = vmatprep.subr.mxu0 0.0
    %299 = vmatpush1.xpose.msra.mxu0 0.0
    %300 = vmatprep.subr.mxu0 0.0
    %301 = vmatpush1.xpose.msra.mxu0 0.0
    %302 = vmatprep.subr.mxu0 0.0
    %303 = vmatpush1.xpose.msra.mxu0 0.0
    %304 = vmatprep.subr.mxu0 0.0
    %305 = vmatpush1.xpose.msra.mxu0 0.0
    %306 = vmatprep.subr.mxu0 0.0
    %307 = vmatpush1.xpose.msra.mxu0 0.0
    %308 = vmatprep.subr.mxu0 0.0
    %309 = vmatpush1.xpose.msra.mxu0 0.0
    %310 = vmatprep.subr.mxu0 0.0
    %311 = vmatpush1.xpose.msra.mxu0 0.0
    %312 = vmatprep.subr.mxu0 0.0
    %313 = vmatpush1.xpose.msra.mxu0 0.0
    %314 = vmatprep.subr.mxu0 0.0
    %315 = vmatpush1.xpose.msra.mxu0 0.0
    %316 = vmatprep.subr.mxu0 0.0
    %317 = vmatpush1.xpose.msra.mxu0 0.0
    %318 = vmatprep.subr.mxu0 0.0
    %319 = vmatpush1.xpose.msra.mxu0 0.0
    %320 = vmatprep.subr.mxu0 0.0
    %321 = vmatpush1.xpose.msra.mxu0 0.0
    %322 = vmatprep.subr.mxu0 0.0
    %323 = vmatpush1.xpose.msra.mxu0 0.0
    %324 = vmatprep.subr.mxu0 0.0
    %325 = vmatpush1.xpose.msra.mxu0 0.0
    %326 = vmatprep.subr.mxu0 0.0
    %327 = vmatpush1.xpose.msra.mxu0 0.0
    %328 = vmatprep.subr.mxu0 0.0
    %329 = vmatpush1.xpose.msra.mxu0 0.0
    %330 = vmatprep.subr.mxu0 0.0
    %331 = vmatpush1.xpose.msra.mxu0 0.0
    %332 = vmatprep.subr.mxu0 0.0
    %333 = vmatpush1.xpose.msra.mxu0 0.0
    %334 = vmatprep.mubr.f32.mxu0 0.0
    %335 = vmatmul.mubr.f32.gmra.mrb[0].mxu0 %v266
    %v336 = vpop.f32.mrb[0].mxu0
    %v337 = vadd.f32 0.0, %v336
    %v338 = vpop.f32.mrb[0].mxu0
    %339 = vdwg.mxu0
    %340 = vrot.lane.b32.xlu0 %v160, 96
    %v341 = vpop.permute.xlu0 %340
    %v343 = vsel %vm187, %v179, 0
    %v345 = vsel %vm187, %v341, 0
    %347 = vmatprep.subr.mxu0 0.0
    %348 = vmatpush1.xpose.msra.mxu0 %v345
    %349 = vmatprep.subr.mxu0 0.0
    %350 = vmatpush1.xpose.msra.mxu0 0.0
    %351 = vmatprep.subr.mxu0 0.0
    %352 = vmatpush1.xpose.msra.mxu0 0.0
    %353 = vmatprep.subr.mxu0 0.0
    %354 = vmatpush1.xpose.msra.mxu0 0.0
    %355 = vmatprep.subr.mxu0 0.0
    %356 = vmatpush1.xpose.msra.mxu0 0.0
    %357 = vmatprep.subr.mxu0 0.0
    %358 = vmatpush1.xpose.msra.mxu0 0.0
    %359 = vmatprep.subr.mxu0 0.0
    %360 = vmatpush1.xpose.msra.mxu0 0.0
    %361 = vmatprep.subr.mxu0 0.0
    %362 = vmatpush1.xpose.msra.mxu0 0.0
    %363 = vmatprep.subr.mxu0 0.0
    %364 = vmatpush1.xpose.msra.mxu0 0.0
    %365 = vmatprep.subr.mxu0 0.0
    %366 = vmatpush1.xpose.msra.mxu0 0.0
    %367 = vmatprep.subr.mxu0 0.0
    %368 = vmatpush1.xpose.msra.mxu0 0.0
    %369 = vmatprep.subr.mxu0 0.0
    %370 = vmatpush1.xpose.msra.mxu0 0.0
    %371 = vmatprep.subr.mxu0 0.0
    %372 = vmatpush1.xpose.msra.mxu0 0.0
    %373 = vmatprep.subr.mxu0 0.0
    %374 = vmatpush1.xpose.msra.mxu0 0.0
    %375 = vmatprep.subr.mxu0 0.0
    %376 = vmatpush1.xpose.msra.mxu0 0.0
    %377 = vmatprep.subr.mxu0 0.0
    %378 = vmatpush1.xpose.msra.mxu0 0.0
    %379 = vmatprep.subr.mxu0 0.0
    %380 = vmatpush1.xpose.msra.mxu0 0.0
    %381 = vmatprep.subr.mxu0 0.0
    %382 = vmatpush1.xpose.msra.mxu0 0.0
    %383 = vmatprep.subr.mxu0 0.0
    %384 = vmatpush1.xpose.msra.mxu0 0.0
    %385 = vmatprep.subr.mxu0 0.0
    %386 = vmatpush1.xpose.msra.mxu0 0.0
    %387 = vmatprep.subr.mxu0 0.0
    %388 = vmatpush1.xpose.msra.mxu0 0.0
    %389 = vmatprep.subr.mxu0 0.0
    %390 = vmatpush1.xpose.msra.mxu0 0.0
    %391 = vmatprep.subr.mxu0 0.0
    %392 = vmatpush1.xpose.msra.mxu0 0.0
    %393 = vmatprep.subr.mxu0 0.0
    %394 = vmatpush1.xpose.msra.mxu0 0.0
    %395 = vmatprep.subr.mxu0 0.0
    %396 = vmatpush1.xpose.msra.mxu0 0.0
    %397 = vmatprep.subr.mxu0 0.0
    %398 = vmatpush1.xpose.msra.mxu0 0.0
    %399 = vmatprep.subr.mxu0 0.0
    %400 = vmatpush1.xpose.msra.mxu0 0.0
    %401 = vmatprep.subr.mxu0 0.0
    %402 = vmatpush1.xpose.msra.mxu0 0.0
    %403 = vmatprep.subr.mxu0 0.0
    %404 = vmatpush1.xpose.msra.mxu0 0.0
    %405 = vmatprep.subr.mxu0 0.0
    %406 = vmatpush1.xpose.msra.mxu0 0.0
    %407 = vmatprep.subr.mxu0 0.0
    %408 = vmatpush1.xpose.msra.mxu0 0.0
    %409 = vmatprep.subr.mxu0 0.0
    %410 = vmatpush1.xpose.msra.mxu0 0.0
    %411 = vmatprep.mubr.f32.mxu0 0.0
    %412 = vmatmul.mubr.f32.gmra.mrb[0].mxu0 %v343
    %v413 = vpop.f32.mrb[0].mxu0
    %v414 = vadd.f32 0.0, %v413
    %v415 = vpop.f32.mrb[0].mxu0
    %416 = vdwg.mxu0
    %417 = vrot.lane.b32.xlu0 %v162, 96
    %v418 = vpop.permute.xlu0 %417
    %v420 = vsel %vm187, %v180, 0
    %v422 = vsel %vm187, %v418, 0
    %424 = vmatprep.subr.mxu0 0.0
    %425 = vmatpush1.xpose.msra.mxu0 %v422
    %426 = vmatprep.subr.mxu0 0.0
    %427 = vmatpush1.xpose.msra.mxu0 0.0
    %428 = vmatprep.subr.mxu0 0.0
    %429 = vmatpush1.xpose.msra.mxu0 0.0
    %430 = vmatprep.subr.mxu0 0.0
    %431 = vmatpush1.xpose.msra.mxu0 0.0
    %432 = vmatprep.subr.mxu0 0.0
    %433 = vmatpush1.xpose.msra.mxu0 0.0
    %434 = vmatprep.subr.mxu0 0.0
    %435 = vmatpush1.xpose.msra.mxu0 0.0
    %436 = vmatprep.subr.mxu0 0.0
    %437 = vmatpush1.xpose.msra.mxu0 0.0
    %438 = vmatprep.subr.mxu0 0.0
    %439 = vmatpush1.xpose.msra.mxu0 0.0
    %440 = vmatprep.subr.mxu0 0.0
    %441 = vmatpush1.xpose.msra.mxu0 0.0
    %442 = vmatprep.subr.mxu0 0.0
    %443 = vmatpush1.xpose.msra.mxu0 0.0
    %444 = vmatprep.subr.mxu0 0.0
    %445 = vmatpush1.xpose.msra.mxu0 0.0
    %446 = vmatprep.subr.mxu0 0.0
    %447 = vmatpush1.xpose.msra.mxu0 0.0
    %448 = vmatprep.subr.mxu0 0.0
    %449 = vmatpush1.xpose.msra.mxu0 0.0
    %450 = vmatprep.subr.mxu0 0.0
    %451 = vmatpush1.xpose.msra.mxu0 0.0
    %452 = vmatprep.subr.mxu0 0.0
    %453 = vmatpush1.xpose.msra.mxu0 0.0
    %454 = vmatprep.subr.mxu0 0.0
    %455 = vmatpush1.xpose.msra.mxu0 0.0
    %456 = vmatprep.subr.mxu0 0.0
    %457 = vmatpush1.xpose.msra.mxu0 0.0
    %458 = vmatprep.subr.mxu0 0.0
    %459 = vmatpush1.xpose.msra.mxu0 0.0
    %460 = vmatprep.subr.mxu0 0.0
    %461 = vmatpush1.xpose.msra.mxu0 0.0
    %462 = vmatprep.subr.mxu0 0.0
    %463 = vmatpush1.xpose.msra.mxu0 0.0
    %464 = vmatprep.subr.mxu0 0.0
    %465 = vmatpush1.xpose.msra.mxu0 0.0
    %466 = vmatprep.subr.mxu0 0.0
    %467 = vmatpush1.xpose.msra.mxu0 0.0
    %468 = vmatprep.subr.mxu0 0.0
    %469 = vmatpush1.xpose.msra.mxu0 0.0
    %470 = vmatprep.subr.mxu0 0.0
    %471 = vmatpush1.xpose.msra.mxu0 0.0
    %472 = vmatprep.subr.mxu0 0.0
    %473 = vmatpush1.xpose.msra.mxu0 0.0
    %474 = vmatprep.subr.mxu0 0.0
    %475 = vmatpush1.xpose.msra.mxu0 0.0
    %476 = vmatprep.subr.mxu0 0.0
    %477 = vmatpush1.xpose.msra.mxu0 0.0
    %478 = vmatprep.subr.mxu0 0.0
    %479 = vmatpush1.xpose.msra.mxu0 0.0
    %480 = vmatprep.subr.mxu0 0.0
    %481 = vmatpush1.xpose.msra.mxu0 0.0
    %482 = vmatprep.subr.mxu0 0.0
    %483 = vmatpush1.xpose.msra.mxu0 0.0
    %484 = vmatprep.subr.mxu0 0.0
    %485 = vmatpush1.xpose.msra.mxu0 0.0
    %486 = vmatprep.subr.mxu0 0.0
    %487 = vmatpush1.xpose.msra.mxu0 0.0
    %488 = vmatprep.mubr.f32.mxu0 0.0
    %489 = vmatmul.mubr.f32.gmra.mrb[0].mxu0 %v420
    %v490 = vpop.f32.mrb[0].mxu0
    %v491 = vadd.f32 0.0, %v490
    %v492 = vpop.f32.mrb[0].mxu0
    %493 = vdwg.mxu0
    %494 = vrot.lane.b32.xlu0 %v166, 96
    %v495 = vpop.permute.xlu0 %494
    %v497 = vsel %vm187, %v181, 0
    %v499 = vsel %vm187, %v495, 0
    %501 = vmatprep.subr.mxu0 0.0
    %502 = vmatpush1.xpose.msra.mxu0 %v499
    %503 = vmatprep.subr.mxu0 0.0
    %504 = vmatpush1.xpose.msra.mxu0 0.0
    %505 = vmatprep.subr.mxu0 0.0
    %506 = vmatpush1.xpose.msra.mxu0 0.0
    %507 = vmatprep.subr.mxu0 0.0
    %508 = vmatpush1.xpose.msra.mxu0 0.0
    %509 = vmatprep.subr.mxu0 0.0
    %510 = vmatpush1.xpose.msra.mxu0 0.0
    %511 = vmatprep.subr.mxu0 0.0
    %512 = vmatpush1.xpose.msra.mxu0 0.0
    %513 = vmatprep.subr.mxu0 0.0
    %514 = vmatpush1.xpose.msra.mxu0 0.0
    %515 = vmatprep.subr.mxu0 0.0
    %516 = vmatpush1.xpose.msra.mxu0 0.0
    %517 = vmatprep.subr.mxu0 0.0
    %518 = vmatpush1.xpose.msra.mxu0 0.0
    %519 = vmatprep.subr.mxu0 0.0
    %520 = vmatpush1.xpose.msra.mxu0 0.0
    %521 = vmatprep.subr.mxu0 0.0
    %522 = vmatpush1.xpose.msra.mxu0 0.0
    %523 = vmatprep.subr.mxu0 0.0
    %524 = vmatpush1.xpose.msra.mxu0 0.0
    %525 = vmatprep.subr.mxu0 0.0
    %526 = vmatpush1.xpose.msra.mxu0 0.0
    %527 = vmatprep.subr.mxu0 0.0
    %528 = vmatpush1.xpose.msra.mxu0 0.0
    %529 = vmatprep.subr.mxu0 0.0
    %530 = vmatpush1.xpose.msra.mxu0 0.0
    %531 = vmatprep.subr.mxu0 0.0
    %532 = vmatpush1.xpose.msra.mxu0 0.0
    %533 = vmatprep.subr.mxu0 0.0
    %534 = vmatpush1.xpose.msra.mxu0 0.0
    %535 = vmatprep.subr.mxu0 0.0
    %536 = vmatpush1.xpose.msra.mxu0 0.0
    %537 = vmatprep.subr.mxu0 0.0
    %538 = vmatpush1.xpose.msra.mxu0 0.0
    %539 = vmatprep.subr.mxu0 0.0
    %540 = vmatpush1.xpose.msra.mxu0 0.0
    %541 = vmatprep.subr.mxu0 0.0
    %542 = vmatpush1.xpose.msra.mxu0 0.0
    %543 = vmatprep.subr.mxu0 0.0
    %544 = vmatpush1.xpose.msra.mxu0 0.0
    %545 = vmatprep.subr.mxu0 0.0
    %546 = vmatpush1.xpose.msra.mxu0 0.0
    %547 = vmatprep.subr.mxu0 0.0
    %548 = vmatpush1.xpose.msra.mxu0 0.0
    %549 = vmatprep.subr.mxu0 0.0
    %550 = vmatpush1.xpose.msra.mxu0 0.0
    %551 = vmatprep.subr.mxu0 0.0
    %552 = vmatpush1.xpose.msra.mxu0 0.0
    %553 = vmatprep.subr.mxu0 0.0
    %554 = vmatpush1.xpose.msra.mxu0 0.0
    %555 = vmatprep.subr.mxu0 0.0
    %556 = vmatpush1.xpose.msra.mxu0 0.0
    %557 = vmatprep.subr.mxu0 0.0
    %558 = vmatpush1.xpose.msra.mxu0 0.0
    %559 = vmatprep.subr.mxu0 0.0
    %560 = vmatpush1.xpose.msra.mxu0 0.0
    %561 = vmatprep.subr.mxu0 0.0
    %562 = vmatpush1.xpose.msra.mxu0 0.0
    %563 = vmatprep.subr.mxu0 0.0
    %564 = vmatpush1.xpose.msra.mxu0 0.0
    %565 = vmatprep.mubr.f32.mxu0 0.0
    %566 = vmatmul.mubr.f32.gmra.mrb[0].mxu0 %v497
    %v567 = vpop.f32.mrb[0].mxu0
    %v568 = vadd.f32 0.0, %v567
    %v569 = vpop.f32.mrb[0].mxu0
    %570 = vdwg.mxu0
    %571 = vrot.lane.b32.xlu0 %v168, 96
    %v572 = vpop.permute.xlu0 %571
    %v574 = vsel %vm187, %v182, 0
    %v576 = vsel %vm187, %v572, 0
    %578 = vmatprep.subr.mxu0 0.0
    %579 = vmatpush1.xpose.msra.mxu0 %v576
    %580 = vmatprep.subr.mxu0 0.0
    %581 = vmatpush1.xpose.msra.mxu0 0.0
    %582 = vmatprep.subr.mxu0 0.0
    %583 = vmatpush1.xpose.msra.mxu0 0.0
    %584 = vmatprep.subr.mxu0 0.0
    %585 = vmatpush1.xpose.msra.mxu0 0.0
    %586 = vmatprep.subr.mxu0 0.0
    %587 = vmatpush1.xpose.msra.mxu0 0.0
    %588 = vmatprep.subr.mxu0 0.0
    %589 = vmatpush1.xpose.msra.mxu0 0.0
    %590 = vmatprep.subr.mxu0 0.0
    %591 = vmatpush1.xpose.msra.mxu0 0.0
    %592 = vmatprep.subr.mxu0 0.0
    %593 = vmatpush1.xpose.msra.mxu0 0.0
    %594 = vmatprep.subr.mxu0 0.0
    %595 = vmatpush1.xpose.msra.mxu0 0.0
    %596 = vmatprep.subr.mxu0 0.0
    %597 = vmatpush1.xpose.msra.mxu0 0.0
    %598 = vmatprep.subr.mxu0 0.0
    %599 = vmatpush1.xpose.msra.mxu0 0.0
    %600 = vmatprep.subr.mxu0 0.0
    %601 = vmatpush1.xpose.msra.mxu0 0.0
    %602 = vmatprep.subr.mxu0 0.0
    %603 = vmatpush1.xpose.msra.mxu0 0.0
    %604 = vmatprep.subr.mxu0 0.0
    %605 = vmatpush1.xpose.msra.mxu0 0.0
    %606 = vmatprep.subr.mxu0 0.0
    %607 = vmatpush1.xpose.msra.mxu0 0.0
    %608 = vmatprep.subr.mxu0 0.0
    %609 = vmatpush1.xpose.msra.mxu0 0.0
    %610 = vmatprep.subr.mxu0 0.0
    %611 = vmatpush1.xpose.msra.mxu0 0.0
    %612 = vmatprep.subr.mxu0 0.0
    %613 = vmatpush1.xpose.msra.mxu0 0.0
    %614 = vmatprep.subr.mxu0 0.0
    %615 = vmatpush1.xpose.msra.mxu0 0.0
    %616 = vmatprep.subr.mxu0 0.0
    %617 = vmatpush1.xpose.msra.mxu0 0.0
    %618 = vmatprep.subr.mxu0 0.0
    %619 = vmatpush1.xpose.msra.mxu0 0.0
    %620 = vmatprep.subr.mxu0 0.0
    %621 = vmatpush1.xpose.msra.mxu0 0.0
    %622 = vmatprep.subr.mxu0 0.0
    %623 = vmatpush1.xpose.msra.mxu0 0.0
    %624 = vmatprep.subr.mxu0 0.0
    %625 = vmatpush1.xpose.msra.mxu0 0.0
    %626 = vmatprep.subr.mxu0 0.0
    %627 = vmatpush1.xpose.msra.mxu0 0.0
    %628 = vmatprep.subr.mxu0 0.0
    %629 = vmatpush1.xpose.msra.mxu0 0.0
    %630 = vmatprep.subr.mxu0 0.0
    %631 = vmatpush1.xpose.msra.mxu0 0.0
    %632 = vmatprep.subr.mxu0 0.0
    %633 = vmatpush1.xpose.msra.mxu0 0.0
    %634 = vmatprep.subr.mxu0 0.0
    %635 = vmatpush1.xpose.msra.mxu0 0.0
    %636 = vmatprep.subr.mxu0 0.0
    %637 = vmatpush1.xpose.msra.mxu0 0.0
    %638 = vmatprep.subr.mxu0 0.0
    %639 = vmatpush1.xpose.msra.mxu0 0.0
    %640 = vmatprep.subr.mxu0 0.0
    %641 = vmatpush1.xpose.msra.mxu0 0.0
    %642 = vmatprep.mubr.f32.mxu0 0.0
    %643 = vmatmul.mubr.f32.gmra.mrb[0].mxu0 %v574
    %v644 = vpop.f32.mrb[0].mxu0
    %v645 = vadd.f32 0.0, %v644
    %v646 = vpop.f32.mrb[0].mxu0
    %647 = vdwg.mxu0
    %648 = vrot.lane.b32.xlu0 %v172, 96
    %v649 = vpop.permute.xlu0 %648
    %v651 = vsel %vm187, %v183, 0
    %v653 = vsel %vm187, %v649, 0
    %655 = vmatprep.subr.mxu0 0.0
    %656 = vmatpush1.xpose.msra.mxu0 %v653
    %657 = vmatprep.subr.mxu0 0.0
    %658 = vmatpush1.xpose.msra.mxu0 0.0
    %659 = vmatprep.subr.mxu0 0.0
    %660 = vmatpush1.xpose.msra.mxu0 0.0
    %661 = vmatprep.subr.mxu0 0.0
    %662 = vmatpush1.xpose.msra.mxu0 0.0
    %663 = vmatprep.subr.mxu0 0.0
    %664 = vmatpush1.xpose.msra.mxu0 0.0
    %665 = vmatprep.subr.mxu0 0.0
    %666 = vmatpush1.xpose.msra.mxu0 0.0
    %667 = vmatprep.subr.mxu0 0.0
    %668 = vmatpush1.xpose.msra.mxu0 0.0
    %669 = vmatprep.subr.mxu0 0.0
    %670 = vmatpush1.xpose.msra.mxu0 0.0
    %671 = vmatprep.subr.mxu0 0.0
    %672 = vmatpush1.xpose.msra.mxu0 0.0
    %673 = vmatprep.subr.mxu0 0.0
    %674 = vmatpush1.xpose.msra.mxu0 0.0
    %675 = vmatprep.subr.mxu0 0.0
    %676 = vmatpush1.xpose.msra.mxu0 0.0
    %677 = vmatprep.subr.mxu0 0.0
    %678 = vmatpush1.xpose.msra.mxu0 0.0
    %679 = vmatprep.subr.mxu0 0.0
    %680 = vmatpush1.xpose.msra.mxu0 0.0
    %681 = vmatprep.subr.mxu0 0.0
    %682 = vmatpush1.xpose.msra.mxu0 0.0
    %683 = vmatprep.subr.mxu0 0.0
    %684 = vmatpush1.xpose.msra.mxu0 0.0
    %685 = vmatprep.subr.mxu0 0.0
    %686 = vmatpush1.xpose.msra.mxu0 0.0
    %687 = vmatprep.subr.mxu0 0.0
    %688 = vmatpush1.xpose.msra.mxu0 0.0
    %689 = vmatprep.subr.mxu0 0.0
    %690 = vmatpush1.xpose.msra.mxu0 0.0
    %691 = vmatprep.subr.mxu0 0.0
    %692 = vmatpush1.xpose.msra.mxu0 0.0
    %693 = vmatprep.subr.mxu0 0.0
    %694 = vmatpush1.xpose.msra.mxu0 0.0
    %695 = vmatprep.subr.mxu0 0.0
    %696 = vmatpush1.xpose.msra.mxu0 0.0
    %697 = vmatprep.subr.mxu0 0.0
    %698 = vmatpush1.xpose.msra.mxu0 0.0
    %699 = vmatprep.subr.mxu0 0.0
    %700 = vmatpush1.xpose.msra.mxu0 0.0
    %701 = vmatprep.subr.mxu0 0.0
    %702 = vmatpush1.xpose.msra.mxu0 0.0
    %703 = vmatprep.subr.mxu0 0.0
    %704 = vmatpush1.xpose.msra.mxu0 0.0
    %705 = vmatprep.subr.mxu0 0.0
    %706 = vmatpush1.xpose.msra.mxu0 0.0
    %707 = vmatprep.subr.mxu0 0.0
    %708 = vmatpush1.xpose.msra.mxu0 0.0
    %709 = vmatprep.subr.mxu0 0.0
    %710 = vmatpush1.xpose.msra.mxu0 0.0
    %711 = vmatprep.subr.mxu0 0.0
    %712 = vmatpush1.xpose.msra.mxu0 0.0
    %713 = vmatprep.subr.mxu0 0.0
    %714 = vmatpush1.xpose.msra.mxu0 0.0
    %715 = vmatprep.subr.mxu0 0.0
    %716 = vmatpush1.xpose.msra.mxu0 0.0
    %717 = vmatprep.subr.mxu0 0.0
    %718 = vmatpush1.xpose.msra.mxu0 0.0
    %719 = vmatprep.mubr.f32.mxu0 0.0
    %720 = vmatmul.mubr.f32.gmra.mrb[0].mxu0 %v651
    %v721 = vpop.f32.mrb[0].mxu0
    %v722 = vadd.f32 0.0, %v721
    %v723 = vpop.f32.mrb[0].mxu0
    %724 = vdwg.mxu0
    %725 = vrot.lane.b32.xlu0 %v174, 96
    %v726 = vpop.permute.xlu0 %725
    %v728 = vsel %vm187, %v184, 0
    %v730 = vsel %vm187, %v726, 0
    %732 = vmatprep.subr.mxu0 0.0
    %733 = vmatpush1.xpose.msra.mxu0 %v730
    %734 = vmatprep.subr.mxu0 0.0
    %735 = vmatpush1.xpose.msra.mxu0 0.0
    %736 = vmatprep.subr.mxu0 0.0
    %737 = vmatpush1.xpose.msra.mxu0 0.0
    %738 = vmatprep.subr.mxu0 0.0
    %739 = vmatpush1.xpose.msra.mxu0 0.0
    %740 = vmatprep.subr.mxu0 0.0
    %741 = vmatpush1.xpose.msra.mxu0 0.0
    %742 = vmatprep.subr.mxu0 0.0
    %743 = vmatpush1.xpose.msra.mxu0 0.0
    %744 = vmatprep.subr.mxu0 0.0
    %745 = vmatpush1.xpose.msra.mxu0 0.0
    %746 = vmatprep.subr.mxu0 0.0
    %747 = vmatpush1.xpose.msra.mxu0 0.0
    %748 = vmatprep.subr.mxu0 0.0
    %749 = vmatpush1.xpose.msra.mxu0 0.0
    %750 = vmatprep.subr.mxu0 0.0
    %751 = vmatpush1.xpose.msra.mxu0 0.0
    %752 = vmatprep.subr.mxu0 0.0
    %753 = vmatpush1.xpose.msra.mxu0 0.0
    %754 = vmatprep.subr.mxu0 0.0
    %755 = vmatpush1.xpose.msra.mxu0 0.0
    %756 = vmatprep.subr.mxu0 0.0
    %757 = vmatpush1.xpose.msra.mxu0 0.0
    %758 = vmatprep.subr.mxu0 0.0
    %759 = vmatpush1.xpose.msra.mxu0 0.0
    %760 = vmatprep.subr.mxu0 0.0
    %761 = vmatpush1.xpose.msra.mxu0 0.0
    %762 = vmatprep.subr.mxu0 0.0
    %763 = vmatpush1.xpose.msra.mxu0 0.0
    %764 = vmatprep.subr.mxu0 0.0
    %765 = vmatpush1.xpose.msra.mxu0 0.0
    %766 = vmatprep.subr.mxu0 0.0
    %767 = vmatpush1.xpose.msra.mxu0 0.0
    %768 = vmatprep.subr.mxu0 0.0
    %769 = vmatpush1.xpose.msra.mxu0 0.0
    %770 = vmatprep.subr.mxu0 0.0
    %771 = vmatpush1.xpose.msra.mxu0 0.0
    %772 = vmatprep.subr.mxu0 0.0
    %773 = vmatpush1.xpose.msra.mxu0 0.0
    %774 = vmatprep.subr.mxu0 0.0
    %775 = vmatpush1.xpose.msra.mxu0 0.0
    %776 = vmatprep.subr.mxu0 0.0
    %777 = vmatpush1.xpose.msra.mxu0 0.0
    %778 = vmatprep.subr.mxu0 0.0
    %779 = vmatpush1.xpose.msra.mxu0 0.0
    %780 = vmatprep.subr.mxu0 0.0
    %781 = vmatpush1.xpose.msra.mxu0 0.0
    %782 = vmatprep.subr.mxu0 0.0
    %783 = vmatpush1.xpose.msra.mxu0 0.0
    %784 = vmatprep.subr.mxu0 0.0
    %785 = vmatpush1.xpose.msra.mxu0 0.0
    %786 = vmatprep.subr.mxu0 0.0
    %787 = vmatpush1.xpose.msra.mxu0 0.0
    %788 = vmatprep.subr.mxu0 0.0
    %789 = vmatpush1.xpose.msra.mxu0 0.0
    %790 = vmatprep.subr.mxu0 0.0
    %791 = vmatpush1.xpose.msra.mxu0 0.0
    %792 = vmatprep.subr.mxu0 0.0
    %793 = vmatpush1.xpose.msra.mxu0 0.0
    %794 = vmatprep.subr.mxu0 0.0
    %795 = vmatpush1.xpose.msra.mxu0 0.0
    %796 = vmatprep.mubr.f32.mxu0 0.0
    %797 = vmatmul.mubr.f32.gmra.mrb[0].mxu0 %v728
    %v798 = vpop.f32.mrb[0].mxu0
    %v799 = vadd.f32 0.0, %v798
    %v800 = vpop.f32.mrb[0].mxu0
    %801 = vdwg.mxu0
    %v802 = vsel %vm187, %v260, -inf
    %803 = vmax.xlane.f32.xlu0 %v802
    %v804 = vpop.xlane.xlu0 %803
    %v805 = vsel %vm187, %v337, -inf
    %806 = vmax.xlane.f32.xlu0 %v805
    %v807 = vpop.xlane.xlu0 %806
    %v808 = vsel %vm187, %v414, -inf
    %809 = vmax.xlane.f32.xlu0 %v808
    %v810 = vpop.xlane.xlu0 %809
    %v811 = vsel %vm187, %v491, -inf
    %812 = vmax.xlane.f32.xlu0 %v811
    %v813 = vpop.xlane.xlu0 %812
    %v814 = vsel %vm187, %v568, -inf
    %815 = vmax.xlane.f32.xlu0 %v814
    %v816 = vpop.xlane.xlu0 %815
    %v817 = vsel %vm187, %v645, -inf
    %818 = vmax.xlane.f32.xlu0 %v817
    %v819 = vpop.xlane.xlu0 %818
    %v820 = vsel %vm187, %v722, -inf
    %821 = vmax.xlane.f32.xlu0 %v820
    %v822 = vpop.xlane.xlu0 %821
    %v823 = vsel %vm187, %v799, -inf
    %824 = vmax.xlane.f32.xlu0 %v823
    %v825 = vpop.xlane.xlu0 %824
    %v826 = vsub.f32 %v260, %v804
    %v827 = vsub.f32 %v337, %v807
    %v828 = vsub.f32 %v414, %v810
    %v829 = vsub.f32 %v491, %v813
    %v830 = vsub.f32 %v568, %v816
    %v831 = vsub.f32 %v645, %v819
    %v832 = vsub.f32 %v722, %v822
    %v833 = vsub.f32 %v799, %v825
    %v834 = vmul.f32 %v826, 1.442695
    %v835 = vpow.pop %v834
    %v836 = vmul.f32 %v827, 1.442695
    %v837 = vpow.pop %v836
    %v838 = vmul.f32 %v828, 1.442695
    %v839 = vpow.pop %v838
    %v840 = vmul.f32 %v829, 1.442695
    %v841 = vpow.pop %v840
    %v842 = vmul.f32 %v830, 1.442695
    %v843 = vpow.pop %v842
    %v844 = vmul.f32 %v831, 1.442695
    %v845 = vpow.pop %v844
    %v846 = vmul.f32 %v832, 1.442695
    %v847 = vpow.pop %v846
    %v848 = vmul.f32 %v833, 1.442695
    %v849 = vpow.pop %v848
    %v850 = vsel %vm187, %v835, 0.0
    %851 = vadd.xlane.f32.xlu0 %v850
    %v852 = vpop.xlane.xlu0 %851
    %v853 = vsel %vm187, %v837, 0.0
    %854 = vadd.xlane.f32.xlu0 %v853
    %v855 = vpop.xlane.xlu0 %854
    %v856 = vsel %vm187, %v839, 0.0
    %857 = vadd.xlane.f32.xlu0 %v856
    %v858 = vpop.xlane.xlu0 %857
    %v859 = vsel %vm187, %v841, 0.0
    %860 = vadd.xlane.f32.xlu0 %v859
    %v861 = vpop.xlane.xlu0 %860
    %v862 = vsel %vm187, %v843, 0.0
    %863 = vadd.xlane.f32.xlu0 %v862
    %v864 = vpop.xlane.xlu0 %863
    %v865 = vsel %vm187, %v845, 0.0
    %866 = vadd.xlane.f32.xlu0 %v865
    %v867 = vpop.xlane.xlu0 %866
    %v868 = vsel %vm187, %v847, 0.0
    %869 = vadd.xlane.f32.xlu0 %v868
    %v870 = vpop.xlane.xlu0 %869
    %v871 = vsel %vm187, %v849, 0.0
    %872 = vadd.xlane.f32.xlu0 %v871
    %v873 = vpop.xlane.xlu0 %872
    %v874 = vrcp.pop %v852
    %v875 = vmul.f32 %v835, %v874
    %v876 = vrcp.pop %v855
    %v877 = vmul.f32 %v837, %v876
    %v878 = vrcp.pop %v858
    %v879 = vmul.f32 %v839, %v878
    %v880 = vrcp.pop %v861
    %v881 = vmul.f32 %v841, %v880
    %v882 = vrcp.pop %v864
    %v883 = vmul.f32 %v843, %v882
    %v884 = vrcp.pop %v867
    %v885 = vmul.f32 %v845, %v884
    %v886 = vrcp.pop %v870
    %v887 = vmul.f32 %v847, %v886
    %v888 = vrcp.pop %v873
    %v889 = vmul.f32 %v849, %v888
    %890 = vrot.lane.b32.xlu0 %v149, 64
    %v891 = vpop.permute.xlu0 %890
    %v894 = vsel %vm187, %v875, 0
    %896 = vmatprep.subr.mxu0 0.0
    %897 = vmatpush1.msra.mxu0 %v891
    %898 = vmatprep.subr.mxu0 0.0
    %899 = vmatpush1.msra.mxu0 0.0
    %900 = vmatprep.subr.mxu0 0.0
    %901 = vmatpush1.msra.mxu0 0.0
    %902 = vmatprep.subr.mxu0 0.0
    %903 = vmatpush1.msra.mxu0 0.0
    %904 = vmatprep.subr.mxu0 0.0
    %905 = vmatpush1.msra.mxu0 0.0
    %906 = vmatprep.subr.mxu0 0.0
    %907 = vmatpush1.msra.mxu0 0.0
    %908 = vmatprep.subr.mxu0 0.0
    %909 = vmatpush1.msra.mxu0 0.0
    %910 = vmatprep.subr.mxu0 0.0
    %911 = vmatpush1.msra.mxu0 0.0
    %912 = vmatprep.subr.mxu0 0.0
    %913 = vmatpush1.msra.mxu0 0.0
    %914 = vmatprep.subr.mxu0 0.0
    %915 = vmatpush1.msra.mxu0 0.0
    %916 = vmatprep.subr.mxu0 0.0
    %917 = vmatpush1.msra.mxu0 0.0
    %918 = vmatprep.subr.mxu0 0.0
    %919 = vmatpush1.msra.mxu0 0.0
    %920 = vmatprep.subr.mxu0 0.0
    %921 = vmatpush1.msra.mxu0 0.0
    %922 = vmatprep.subr.mxu0 0.0
    %923 = vmatpush1.msra.mxu0 0.0
    %924 = vmatprep.subr.mxu0 0.0
    %925 = vmatpush1.msra.mxu0 0.0
    %926 = vmatprep.subr.mxu0 0.0
    %927 = vmatpush1.msra.mxu0 0.0
    %928 = vmatprep.subr.mxu0 0.0
    %929 = vmatpush1.msra.mxu0 0.0
    %930 = vmatprep.subr.mxu0 0.0
    %931 = vmatpush1.msra.mxu0 0.0
    %932 = vmatprep.subr.mxu0 0.0
    %933 = vmatpush1.msra.mxu0 0.0
    %934 = vmatprep.subr.mxu0 0.0
    %935 = vmatpush1.msra.mxu0 0.0
    %936 = vmatprep.subr.mxu0 0.0
    %937 = vmatpush1.msra.mxu0 0.0
    %938 = vmatprep.subr.mxu0 0.0
    %939 = vmatpush1.msra.mxu0 0.0
    %940 = vmatprep.subr.mxu0 0.0
    %941 = vmatpush1.msra.mxu0 0.0
    %942 = vmatprep.subr.mxu0 0.0
    %943 = vmatpush1.msra.mxu0 0.0
    %944 = vmatprep.subr.mxu0 0.0
    %945 = vmatpush1.msra.mxu0 0.0
    %946 = vmatprep.subr.mxu0 0.0
    %947 = vmatpush1.msra.mxu0 0.0
    %948 = vmatprep.subr.mxu0 0.0
    %949 = vmatpush1.msra.mxu0 0.0
    %950 = vmatprep.subr.mxu0 0.0
    %951 = vmatpush1.msra.mxu0 0.0
    %952 = vmatprep.subr.mxu0 0.0
    %953 = vmatpush1.msra.mxu0 0.0
    %954 = vmatprep.subr.mxu0 0.0
    %955 = vmatpush1.msra.mxu0 0.0
    %956 = vmatprep.subr.mxu0 0.0
    %957 = vmatpush1.msra.mxu0 0.0
    %958 = vmatprep.subr.mxu0 0.0
    %959 = vmatpush1.msra.mxu0 0.0
    %960 = vmatprep.mubr.f32.mxu0 0.0
    %961 = vmatmul.mubr.f32.gmra.mrb[0].mxu0 %v894
    %v962 = vpop.f32.mrb[0].mxu0
    %v963 = vadd.f32 0.0, %v962
    %v964 = vpop.f32.mrb[0].mxu0
    %965 = vdwg.mxu0
    %966 = vrot.lane.b32.xlu0 %v154, 64
    %v967 = vpop.permute.xlu0 %966
    %v970 = vsel %vm187, %v877, 0
    %972 = vmatprep.subr.mxu0 0.0
    %973 = vmatpush1.msra.mxu0 %v967
    %974 = vmatprep.subr.mxu0 0.0
    %975 = vmatpush1.msra.mxu0 0.0
    %976 = vmatprep.subr.mxu0 0.0
    %977 = vmatpush1.msra.mxu0 0.0
    %978 = vmatprep.subr.mxu0 0.0
    %979 = vmatpush1.msra.mxu0 0.0
    %980 = vmatprep.subr.mxu0 0.0
    %981 = vmatpush1.msra.mxu0 0.0
    %982 = vmatprep.subr.mxu0 0.0
    %983 = vmatpush1.msra.mxu0 0.0
    %984 = vmatprep.subr.mxu0 0.0
    %985 = vmatpush1.msra.mxu0 0.0
    %986 = vmatprep.subr.mxu0 0.0
    %987 = vmatpush1.msra.mxu0 0.0
    %988 = vmatprep.subr.mxu0 0.0
    %989 = vmatpush1.msra.mxu0 0.0
    %990 = vmatprep.subr.mxu0 0.0
    %991 = vmatpush1.msra.mxu0 0.0
    %992 = vmatprep.subr.mxu0 0.0
    %993 = vmatpush1.msra.mxu0 0.0
    %994 = vmatprep.subr.mxu0 0.0
    %995 = vmatpush1.msra.mxu0 0.0
    %996 = vmatprep.subr.mxu0 0.0
    %997 = vmatpush1.msra.mxu0 0.0
    %998 = vmatprep.subr.mxu0 0.0
    %999 = vmatpush1.msra.mxu0 0.0
    %1000 = vmatprep.subr.mxu0 0.0
    %1001 = vmatpush1.msra.mxu0 0.0
    %1002 = vmatprep.subr.mxu0 0.0
    %1003 = vmatpush1.msra.mxu0 0.0
    %1004 = vmatprep.subr.mxu0 0.0
    %1005 = vmatpush1.msra.mxu0 0.0
    %1006 = vmatprep.subr.mxu0 0.0
    %1007 = vmatpush1.msra.mxu0 0.0
    %1008 = vmatprep.subr.mxu0 0.0
    %1009 = vmatpush1.msra.mxu0 0.0
    %1010 = vmatprep.subr.mxu0 0.0
    %1011 = vmatpush1.msra.mxu0 0.0
    %1012 = vmatprep.subr.mxu0 0.0
    %1013 = vmatpush1.msra.mxu0 0.0
    %1014 = vmatprep.subr.mxu0 0.0
    %1015 = vmatpush1.msra.mxu0 0.0
    %1016 = vmatprep.subr.mxu0 0.0
    %1017 = vmatpush1.msra.mxu0 0.0
    %1018 = vmatprep.subr.mxu0 0.0
    %1019 = vmatpush1.msra.mxu0 0.0
    %1020 = vmatprep.subr.mxu0 0.0
    %1021 = vmatpush1.msra.mxu0 0.0
    %1022 = vmatprep.subr.mxu0 0.0
    %1023 = vmatpush1.msra.mxu0 0.0
    %1024 = vmatprep.subr.mxu0 0.0
    %1025 = vmatpush1.msra.mxu0 0.0
    %1026 = vmatprep.subr.mxu0 0.0
    %1027 = vmatpush1.msra.mxu0 0.0
    %1028 = vmatprep.subr.mxu0 0.0
    %1029 = vmatpush1.msra.mxu0 0.0
    %1030 = vmatprep.subr.mxu0 0.0
    %1031 = vmatpush1.msra.mxu0 0.0
    %1032 = vmatprep.subr.mxu0 0.0
    %1033 = vmatpush1.msra.mxu0 0.0
    %1034 = vmatprep.subr.mxu0 0.0
    %1035 = vmatpush1.msra.mxu0 0.0
    %1036 = vmatprep.mubr.f32.mxu0 0.0
    %1037 = vmatmul.mubr.f32.gmra.mrb[0].mxu0 %v970
    %v1038 = vpop.f32.mrb[0].mxu0
    %v1039 = vadd.f32 0.0, %v1038
    %v1040 = vpop.f32.mrb[0].mxu0
    %1041 = vdwg.mxu0
    %1042 = vrot.lane.b32.xlu0 %v160, 64
    %v1043 = vpop.permute.xlu0 %1042
    %v1046 = vsel %vm187, %v879, 0
    %1048 = vmatprep.subr.mxu0 0.0
    %1049 = vmatpush1.msra.mxu0 %v1043
    %1050 = vmatprep.subr.mxu0 0.0
    %1051 = vmatpush1.msra.mxu0 0.0
    %1052 = vmatprep.subr.mxu0 0.0
    %1053 = vmatpush1.msra.mxu0 0.0
    %1054 = vmatprep.subr.mxu0 0.0
    %1055 = vmatpush1.msra.mxu0 0.0
    %1056 = vmatprep.subr.mxu0 0.0
    %1057 = vmatpush1.msra.mxu0 0.0
    %1058 = vmatprep.subr.mxu0 0.0
    %1059 = vmatpush1.msra.mxu0 0.0
    %1060 = vmatprep.subr.mxu0 0.0
    %1061 = vmatpush1.msra.mxu0 0.0
    %1062 = vmatprep.subr.mxu0 0.0
    %1063 = vmatpush1.msra.mxu0 0.0
    %1064 = vmatprep.subr.mxu0 0.0
    %1065 = vmatpush1.msra.mxu0 0.0
    %1066 = vmatprep.subr.mxu0 0.0
    %1067 = vmatpush1.msra.mxu0 0.0
    %1068 = vmatprep.subr.mxu0 0.0
    %1069 = vmatpush1.msra.mxu0 0.0
    %1070 = vmatprep.subr.mxu0 0.0
    %1071 = vmatpush1.msra.mxu0 0.0
    %1072 = vmatprep.subr.mxu0 0.0
    %1073 = vmatpush1.msra.mxu0 0.0
    %1074 = vmatprep.subr.mxu0 0.0
    %1075 = vmatpush1.msra.mxu0 0.0
    %1076 = vmatprep.subr.mxu0 0.0
    %1077 = vmatpush1.msra.mxu0 0.0
    %1078 = vmatprep.subr.mxu0 0.0
    %1079 = vmatpush1.msra.mxu0 0.0
    %1080 = vmatprep.subr.mxu0 0.0
    %1081 = vmatpush1.msra.mxu0 0.0
    %1082 = vmatprep.subr.mxu0 0.0
    %1083 = vmatpush1.msra.mxu0 0.0
    %1084 = vmatprep.subr.mxu0 0.0
    %1085 = vmatpush1.msra.mxu0 0.0
    %1086 = vmatprep.subr.mxu0 0.0
    %1087 = vmatpush1.msra.mxu0 0.0
    %1088 = vmatprep.subr.mxu0 0.0
    %1089 = vmatpush1.msra.mxu0 0.0
    %1090 = vmatprep.subr.mxu0 0.0
    %1091 = vmatpush1.msra.mxu0 0.0
    %1092 = vmatprep.subr.mxu0 0.0
    %1093 = vmatpush1.msra.mxu0 0.0
    %1094 = vmatprep.subr.mxu0 0.0
    %1095 = vmatpush1.msra.mxu0 0.0
    %1096 = vmatprep.subr.mxu0 0.0
    %1097 = vmatpush1.msra.mxu0 0.0
    %1098 = vmatprep.subr.mxu0 0.0
    %1099 = vmatpush1.msra.mxu0 0.0
    %1100 = vmatprep.subr.mxu0 0.0
    %1101 = vmatpush1.msra.mxu0 0.0
    %1102 = vmatprep.subr.mxu0 0.0
    %1103 = vmatpush1.msra.mxu0 0.0
    %1104 = vmatprep.subr.mxu0 0.0
    %1105 = vmatpush1.msra.mxu0 0.0
    %1106 = vmatprep.subr.mxu0 0.0
    %1107 = vmatpush1.msra.mxu0 0.0
    %1108 = vmatprep.subr.mxu0 0.0
    %1109 = vmatpush1.msra.mxu0 0.0
    %1110 = vmatprep.subr.mxu0 0.0
    %1111 = vmatpush1.msra.mxu0 0.0
    %1112 = vmatprep.mubr.f32.mxu0 0.0
    %1113 = vmatmul.mubr.f32.gmra.mrb[0].mxu0 %v1046
    %v1114 = vpop.f32.mrb[0].mxu0
    %v1115 = vadd.f32 0.0, %v1114
    %v1116 = vpop.f32.mrb[0].mxu0
    %1117 = vdwg.mxu0
    %1118 = vrot.lane.b32.xlu0 %v162, 64
    %v1119 = vpop.permute.xlu0 %1118
    %v1122 = vsel %vm187, %v881, 0
    %1124 = vmatprep.subr.mxu0 0.0
    %1125 = vmatpush1.msra.mxu0 %v1119
    %1126 = vmatprep.subr.mxu0 0.0
    %1127 = vmatpush1.msra.mxu0 0.0
    %1128 = vmatprep.subr.mxu0 0.0
    %1129 = vmatpush1.msra.mxu0 0.0
    %1130 = vmatprep.subr.mxu0 0.0
    %1131 = vmatpush1.msra.mxu0 0.0
    %1132 = vmatprep.subr.mxu0 0.0
    %1133 = vmatpush1.msra.mxu0 0.0
    %1134 = vmatprep.subr.mxu0 0.0
    %1135 = vmatpush1.msra.mxu0 0.0
    %1136 = vmatprep.subr.mxu0 0.0
    %1137 = vmatpush1.msra.mxu0 0.0
    %1138 = vmatprep.subr.mxu0 0.0
    %1139 = vmatpush1.msra.mxu0 0.0
    %1140 = vmatprep.subr.mxu0 0.0
    %1141 = vmatpush1.msra.mxu0 0.0
    %1142 = vmatprep.subr.mxu0 0.0
    %1143 = vmatpush1.msra.mxu0 0.0
    %1144 = vmatprep.subr.mxu0 0.0
    %1145 = vmatpush1.msra.mxu0 0.0
    %1146 = vmatprep.subr.mxu0 0.0
    %1147 = vmatpush1.msra.mxu0 0.0
    %1148 = vmatprep.subr.mxu0 0.0
    %1149 = vmatpush1.msra.mxu0 0.0
    %1150 = vmatprep.subr.mxu0 0.0
    %1151 = vmatpush1.msra.mxu0 0.0
    %1152 = vmatprep.subr.mxu0 0.0
    %1153 = vmatpush1.msra.mxu0 0.0
    %1154 = vmatprep.subr.mxu0 0.0
    %1155 = vmatpush1.msra.mxu0 0.0
    %1156 = vmatprep.subr.mxu0 0.0
    %1157 = vmatpush1.msra.mxu0 0.0
    %1158 = vmatprep.subr.mxu0 0.0
    %1159 = vmatpush1.msra.mxu0 0.0
    %1160 = vmatprep.subr.mxu0 0.0
    %1161 = vmatpush1.msra.mxu0 0.0
    %1162 = vmatprep.subr.mxu0 0.0
    %1163 = vmatpush1.msra.mxu0 0.0
    %1164 = vmatprep.subr.mxu0 0.0
    %1165 = vmatpush1.msra.mxu0 0.0
    %1166 = vmatprep.subr.mxu0 0.0
    %1167 = vmatpush1.msra.mxu0 0.0
    %1168 = vmatprep.subr.mxu0 0.0
    %1169 = vmatpush1.msra.mxu0 0.0
    %1170 = vmatprep.subr.mxu0 0.0
    %1171 = vmatpush1.msra.mxu0 0.0
    %1172 = vmatprep.subr.mxu0 0.0
    %1173 = vmatpush1.msra.mxu0 0.0
    %1174 = vmatprep.subr.mxu0 0.0
    %1175 = vmatpush1.msra.mxu0 0.0
    %1176 = vmatprep.subr.mxu0 0.0
    %1177 = vmatpush1.msra.mxu0 0.0
    %1178 = vmatprep.subr.mxu0 0.0
    %1179 = vmatpush1.msra.mxu0 0.0
    %1180 = vmatprep.subr.mxu0 0.0
    %1181 = vmatpush1.msra.mxu0 0.0
    %1182 = vmatprep.subr.mxu0 0.0
    %1183 = vmatpush1.msra.mxu0 0.0
    %1184 = vmatprep.subr.mxu0 0.0
    %1185 = vmatpush1.msra.mxu0 0.0
    %1186 = vmatprep.subr.mxu0 0.0
    %1187 = vmatpush1.msra.mxu0 0.0
    %1188 = vmatprep.mubr.f32.mxu0 0.0
    %1189 = vmatmul.mubr.f32.gmra.mrb[0].mxu0 %v1122
    %v1190 = vpop.f32.mrb[0].mxu0
    %v1191 = vadd.f32 0.0, %v1190
    %v1192 = vpop.f32.mrb[0].mxu0
    %1193 = vdwg.mxu0
    %1194 = vrot.lane.b32.xlu0 %v166, 64
    %v1195 = vpop.permute.xlu0 %1194
    %v1198 = vsel %vm187, %v883, 0
    %1200 = vmatprep.subr.mxu0 0.0
    %1201 = vmatpush1.msra.mxu0 %v1195
    %1202 = vmatprep.subr.mxu0 0.0
    %1203 = vmatpush1.msra.mxu0 0.0
    %1204 = vmatprep.subr.mxu0 0.0
    %1205 = vmatpush1.msra.mxu0 0.0
    %1206 = vmatprep.subr.mxu0 0.0
    %1207 = vmatpush1.msra.mxu0 0.0
    %1208 = vmatprep.subr.mxu0 0.0
    %1209 = vmatpush1.msra.mxu0 0.0
    %1210 = vmatprep.subr.mxu0 0.0
    %1211 = vmatpush1.msra.mxu0 0.0
    %1212 = vmatprep.subr.mxu0 0.0
    %1213 = vmatpush1.msra.mxu0 0.0
    %1214 = vmatprep.subr.mxu0 0.0
    %1215 = vmatpush1.msra.mxu0 0.0
    %1216 = vmatprep.subr.mxu0 0.0
    %1217 = vmatpush1.msra.mxu0 0.0
    %1218 = vmatprep.subr.mxu0 0.0
    %1219 = vmatpush1.msra.mxu0 0.0
    %1220 = vmatprep.subr.mxu0 0.0
    %1221 = vmatpush1.msra.mxu0 0.0
    %1222 = vmatprep.subr.mxu0 0.0
    %1223 = vmatpush1.msra.mxu0 0.0
    %1224 = vmatprep.subr.mxu0 0.0
    %1225 = vmatpush1.msra.mxu0 0.0
    %1226 = vmatprep.subr.mxu0 0.0
    %1227 = vmatpush1.msra.mxu0 0.0
    %1228 = vmatprep.subr.mxu0 0.0
    %1229 = vmatpush1.msra.mxu0 0.0
    %1230 = vmatprep.subr.mxu0 0.0
    %1231 = vmatpush1.msra.mxu0 0.0
    %1232 = vmatprep.subr.mxu0 0.0
    %1233 = vmatpush1.msra.mxu0 0.0
    %1234 = vmatprep.subr.mxu0 0.0
    %1235 = vmatpush1.msra.mxu0 0.0
    %1236 = vmatprep.subr.mxu0 0.0
    %1237 = vmatpush1.msra.mxu0 0.0
    %1238 = vmatprep.subr.mxu0 0.0
    %1239 = vmatpush1.msra.mxu0 0.0
    %1240 = vmatprep.subr.mxu0 0.0
    %1241 = vmatpush1.msra.mxu0 0.0
    %1242 = vmatprep.subr.mxu0 0.0
    %1243 = vmatpush1.msra.mxu0 0.0
    %1244 = vmatprep.subr.mxu0 0.0
    %1245 = vmatpush1.msra.mxu0 0.0
    %1246 = vmatprep.subr.mxu0 0.0
    %1247 = vmatpush1.msra.mxu0 0.0
    %1248 = vmatprep.subr.mxu0 0.0
    %1249 = vmatpush1.msra.mxu0 0.0
    %1250 = vmatprep.subr.mxu0 0.0
    %1251 = vmatpush1.msra.mxu0 0.0
    %1252 = vmatprep.subr.mxu0 0.0
    %1253 = vmatpush1.msra.mxu0 0.0
    %1254 = vmatprep.subr.mxu0 0.0
    %1255 = vmatpush1.msra.mxu0 0.0
    %1256 = vmatprep.subr.mxu0 0.0
    %1257 = vmatpush1.msra.mxu0 0.0
    %1258 = vmatprep.subr.mxu0 0.0
    %1259 = vmatpush1.msra.mxu0 0.0
    %1260 = vmatprep.subr.mxu0 0.0
    %1261 = vmatpush1.msra.mxu0 0.0
    %1262 = vmatprep.subr.mxu0 0.0
    %1263 = vmatpush1.msra.mxu0 0.0
    %1264 = vmatprep.mubr.f32.mxu0 0.0
    %1265 = vmatmul.mubr.f32.gmra.mrb[0].mxu0 %v1198
    %v1266 = vpop.f32.mrb[0].mxu0
    %v1267 = vadd.f32 0.0, %v1266
    %v1268 = vpop.f32.mrb[0].mxu0
    %1269 = vdwg.mxu0
    %1270 = vrot.lane.b32.xlu0 %v168, 64
    %v1271 = vpop.permute.xlu0 %1270
    %v1274 = vsel %vm187, %v885, 0
    %1276 = vmatprep.subr.mxu0 0.0
    %1277 = vmatpush1.msra.mxu0 %v1271
    %1278 = vmatprep.subr.mxu0 0.0
    %1279 = vmatpush1.msra.mxu0 0.0
    %1280 = vmatprep.subr.mxu0 0.0
    %1281 = vmatpush1.msra.mxu0 0.0
    %1282 = vmatprep.subr.mxu0 0.0
    %1283 = vmatpush1.msra.mxu0 0.0
    %1284 = vmatprep.subr.mxu0 0.0
    %1285 = vmatpush1.msra.mxu0 0.0
    %1286 = vmatprep.subr.mxu0 0.0
    %1287 = vmatpush1.msra.mxu0 0.0
    %1288 = vmatprep.subr.mxu0 0.0
    %1289 = vmatpush1.msra.mxu0 0.0
    %1290 = vmatprep.subr.mxu0 0.0
    %1291 = vmatpush1.msra.mxu0 0.0
    %1292 = vmatprep.subr.mxu0 0.0
    %1293 = vmatpush1.msra.mxu0 0.0
    %1294 = vmatprep.subr.mxu0 0.0
    %1295 = vmatpush1.msra.mxu0 0.0
    %1296 = vmatprep.subr.mxu0 0.0
    %1297 = vmatpush1.msra.mxu0 0.0
    %1298 = vmatprep.subr.mxu0 0.0
    %1299 = vmatpush1.msra.mxu0 0.0
    %1300 = vmatprep.subr.mxu0 0.0
    %1301 = vmatpush1.msra.mxu0 0.0
    %1302 = vmatprep.subr.mxu0 0.0
    %1303 = vmatpush1.msra.mxu0 0.0
    %1304 = vmatprep.subr.mxu0 0.0
    %1305 = vmatpush1.msra.mxu0 0.0
    %1306 = vmatprep.subr.mxu0 0.0
    %1307 = vmatpush1.msra.mxu0 0.0
    %1308 = vmatprep.subr.mxu0 0.0
    %1309 = vmatpush1.msra.mxu0 0.0
    %1310 = vmatprep.subr.mxu0 0.0
    %1311 = vmatpush1.msra.mxu0 0.0
    %1312 = vmatprep.subr.mxu0 0.0
    %1313 = vmatpush1.msra.mxu0 0.0
    %1314 = vmatprep.subr.mxu0 0.0
    %1315 = vmatpush1.msra.mxu0 0.0
    %1316 = vmatprep.subr.mxu0 0.0
    %1317 = vmatpush1.msra.mxu0 0.0
    %1318 = vmatprep.subr.mxu0 0.0
    %1319 = vmatpush1.msra.mxu0 0.0
    %1320 = vmatprep.subr.mxu0 0.0
    %1321 = vmatpush1.msra.mxu0 0.0
    %1322 = vmatprep.subr.mxu0 0.0
    %1323 = vmatpush1.msra.mxu0 0.0
    %1324 = vmatprep.subr.mxu0 0.0
    %1325 = vmatpush1.msra.mxu0 0.0
    %1326 = vmatprep.subr.mxu0 0.0
    %1327 = vmatpush1.msra.mxu0 0.0
    %1328 = vmatprep.subr.mxu0 0.0
    %1329 = vmatpush1.msra.mxu0 0.0
    %1330 = vmatprep.subr.mxu0 0.0
    %1331 = vmatpush1.msra.mxu0 0.0
    %1332 = vmatprep.subr.mxu0 0.0
    %1333 = vmatpush1.msra.mxu0 0.0
    %1334 = vmatprep.subr.mxu0 0.0
    %1335 = vmatpush1.msra.mxu0 0.0
    %1336 = vmatprep.subr.mxu0 0.0
    %1337 = vmatpush1.msra.mxu0 0.0
    %1338 = vmatprep.subr.mxu0 0.0
    %1339 = vmatpush1.msra.mxu0 0.0
    %1340 = vmatprep.mubr.f32.mxu0 0.0
    %1341 = vmatmul.mubr.f32.gmra.mrb[0].mxu0 %v1274
    %v1342 = vpop.f32.mrb[0].mxu0
    %v1343 = vadd.f32 0.0, %v1342
    %v1344 = vpop.f32.mrb[0].mxu0
    %1345 = vdwg.mxu0
    %1346 = vrot.lane.b32.xlu0 %v172, 64
    %v1347 = vpop.permute.xlu0 %1346
    %v1350 = vsel %vm187, %v887, 0
    %1352 = vmatprep.subr.mxu0 0.0
    %1353 = vmatpush1.msra.mxu0 %v1347
    %1354 = vmatprep.subr.mxu0 0.0
    %1355 = vmatpush1.msra.mxu0 0.0
    %1356 = vmatprep.subr.mxu0 0.0
    %1357 = vmatpush1.msra.mxu0 0.0
    %1358 = vmatprep.subr.mxu0 0.0
    %1359 = vmatpush1.msra.mxu0 0.0
    %1360 = vmatprep.subr.mxu0 0.0
    %1361 = vmatpush1.msra.mxu0 0.0
    %1362 = vmatprep.subr.mxu0 0.0
    %1363 = vmatpush1.msra.mxu0 0.0
    %1364 = vmatprep.subr.mxu0 0.0
    %1365 = vmatpush1.msra.mxu0 0.0
    %1366 = vmatprep.subr.mxu0 0.0
    %1367 = vmatpush1.msra.mxu0 0.0
    %1368 = vmatprep.subr.mxu0 0.0
    %1369 = vmatpush1.msra.mxu0 0.0
    %1370 = vmatprep.subr.mxu0 0.0
    %1371 = vmatpush1.msra.mxu0 0.0
    %1372 = vmatprep.subr.mxu0 0.0
    %1373 = vmatpush1.msra.mxu0 0.0
    %1374 = vmatprep.subr.mxu0 0.0
    %1375 = vmatpush1.msra.mxu0 0.0
    %1376 = vmatprep.subr.mxu0 0.0
    %1377 = vmatpush1.msra.mxu0 0.0
    %1378 = vmatprep.subr.mxu0 0.0
    %1379 = vmatpush1.msra.mxu0 0.0
    %1380 = vmatprep.subr.mxu0 0.0
    %1381 = vmatpush1.msra.mxu0 0.0
    %1382 = vmatprep.subr.mxu0 0.0
    %1383 = vmatpush1.msra.mxu0 0.0
    %1384 = vmatprep.subr.mxu0 0.0
    %1385 = vmatpush1.msra.mxu0 0.0
    %1386 = vmatprep.subr.mxu0 0.0
    %1387 = vmatpush1.msra.mxu0 0.0
    %1388 = vmatprep.subr.mxu0 0.0
    %1389 = vmatpush1.msra.mxu0 0.0
    %1390 = vmatprep.subr.mxu0 0.0
    %1391 = vmatpush1.msra.mxu0 0.0
    %1392 = vmatprep.subr.mxu0 0.0
    %1393 = vmatpush1.msra.mxu0 0.0
    %1394 = vmatprep.subr.mxu0 0.0
    %1395 = vmatpush1.msra.mxu0 0.0
    %1396 = vmatprep.subr.mxu0 0.0
    %1397 = vmatpush1.msra.mxu0 0.0
    %1398 = vmatprep.subr.mxu0 0.0
    %1399 = vmatpush1.msra.mxu0 0.0
    %1400 = vmatprep.subr.mxu0 0.0
    %1401 = vmatpush1.msra.mxu0 0.0
    %1402 = vmatprep.subr.mxu0 0.0
    %1403 = vmatpush1.msra.mxu0 0.0
    %1404 = vmatprep.subr.mxu0 0.0
    %1405 = vmatpush1.msra.mxu0 0.0
    %1406 = vmatprep.subr.mxu0 0.0
    %1407 = vmatpush1.msra.mxu0 0.0
    %1408 = vmatprep.subr.mxu0 0.0
    %1409 = vmatpush1.msra.mxu0 0.0
    %1410 = vmatprep.subr.mxu0 0.0
    %1411 = vmatpush1.msra.mxu0 0.0
    %1412 = vmatprep.subr.mxu0 0.0
    %1413 = vmatpush1.msra.mxu0 0.0
    %1414 = vmatprep.subr.mxu0 0.0
    %1415 = vmatpush1.msra.mxu0 0.0
    %1416 = vmatprep.mubr.f32.mxu0 0.0
    %1417 = vmatmul.mubr.f32.gmra.mrb[0].mxu0 %v1350
    %v1418 = vpop.f32.mrb[0].mxu0
    %v1419 = vadd.f32 0.0, %v1418
    %v1420 = vpop.f32.mrb[0].mxu0
    %1421 = vdwg.mxu0
    %1422 = vrot.lane.b32.xlu0 %v174, 64
    %v1423 = vpop.permute.xlu0 %1422
    %v1426 = vsel %vm187, %v889, 0
    %1428 = vmatprep.subr.mxu0 0.0
    %1429 = vmatpush1.msra.mxu0 %v1423
    %1430 = vmatprep.subr.mxu0 0.0
    %1431 = vmatpush1.msra.mxu0 0.0
    %1432 = vmatprep.subr.mxu0 0.0
    %1433 = vmatpush1.msra.mxu0 0.0
    %1434 = vmatprep.subr.mxu0 0.0
    %1435 = vmatpush1.msra.mxu0 0.0
    %1436 = vmatprep.subr.mxu0 0.0
    %1437 = vmatpush1.msra.mxu0 0.0
    %1438 = vmatprep.subr.mxu0 0.0
    %1439 = vmatpush1.msra.mxu0 0.0
    %1440 = vmatprep.subr.mxu0 0.0
    %1441 = vmatpush1.msra.mxu0 0.0
    %1442 = vmatprep.subr.mxu0 0.0
    %1443 = vmatpush1.msra.mxu0 0.0
    %1444 = vmatprep.subr.mxu0 0.0
    %1445 = vmatpush1.msra.mxu0 0.0
    %1446 = vmatprep.subr.mxu0 0.0
    %1447 = vmatpush1.msra.mxu0 0.0
    %1448 = vmatprep.subr.mxu0 0.0
    %1449 = vmatpush1.msra.mxu0 0.0
    %1450 = vmatprep.subr.mxu0 0.0
    %1451 = vmatpush1.msra.mxu0 0.0
    %1452 = vmatprep.subr.mxu0 0.0
    %1453 = vmatpush1.msra.mxu0 0.0
    %1454 = vmatprep.subr.mxu0 0.0
    %1455 = vmatpush1.msra.mxu0 0.0
    %1456 = vmatprep.subr.mxu0 0.0
    %1457 = vmatpush1.msra.mxu0 0.0
    %1458 = vmatprep.subr.mxu0 0.0
    %1459 = vmatpush1.msra.mxu0 0.0
    %1460 = vmatprep.subr.mxu0 0.0
    %1461 = vmatpush1.msra.mxu0 0.0
    %1462 = vmatprep.subr.mxu0 0.0
    %1463 = vmatpush1.msra.mxu0 0.0
    %1464 = vmatprep.subr.mxu0 0.0
    %1465 = vmatpush1.msra.mxu0 0.0
    %1466 = vmatprep.subr.mxu0 0.0
    %1467 = vmatpush1.msra.mxu0 0.0
    %1468 = vmatprep.subr.mxu0 0.0
    %1469 = vmatpush1.msra.mxu0 0.0
    %1470 = vmatprep.subr.mxu0 0.0
    %1471 = vmatpush1.msra.mxu0 0.0
    %1472 = vmatprep.subr.mxu0 0.0
    %1473 = vmatpush1.msra.mxu0 0.0
    %1474 = vmatprep.subr.mxu0 0.0
    %1475 = vmatpush1.msra.mxu0 0.0
    %1476 = vmatprep.subr.mxu0 0.0
    %1477 = vmatpush1.msra.mxu0 0.0
    %1478 = vmatprep.subr.mxu0 0.0
    %1479 = vmatpush1.msra.mxu0 0.0
    %1480 = vmatprep.subr.mxu0 0.0
    %1481 = vmatpush1.msra.mxu0 0.0
    %1482 = vmatprep.subr.mxu0 0.0
    %1483 = vmatpush1.msra.mxu0 0.0
    %1484 = vmatprep.subr.mxu0 0.0
    %1485 = vmatpush1.msra.mxu0 0.0
    %1486 = vmatprep.subr.mxu0 0.0
    %1487 = vmatpush1.msra.mxu0 0.0
    %1488 = vmatprep.subr.mxu0 0.0
    %1489 = vmatpush1.msra.mxu0 0.0
    %1490 = vmatprep.subr.mxu0 0.0
    %1491 = vmatpush1.msra.mxu0 0.0
    %1492 = vmatprep.mubr.f32.mxu0 0.0
    %1493 = vmatmul.mubr.f32.gmra.mrb[0].mxu0 %v1426
    %v1494 = vpop.f32.mrb[0].mxu0
    %v1495 = vadd.f32 0.0, %v1494
    %v1496 = vpop.f32.mrb[0].mxu0
    %1497 = vdwg.mxu0
    %v1498 = vld [vmem:[#allocation7] sm:$0xff]
    %v1499 = vld [vmem:[#allocation7 + $0x8] sm:$0xff]
    %v1500 = vld [vmem:[#allocation7 + $0x10] sm:$0xff]
    %v1501 = vld [vmem:[#allocation7 + $0x18] sm:$0xff]
    %v1503 = vsel %vm187, %v963, 0
    %v1506 = vsel %vm187, %v1039, 0
    %1508 = vmatprep.subr.mxu0 0.0
    %1509 = vmatpush1.msra.mxu0 %v1498
    %1510 = vmatprep.subr.mxu0 0.0
    %1511 = vmatpush1.msra.mxu0 0.0
    %1512 = vmatprep.subr.mxu0 0.0
    %1513 = vmatpush1.msra.mxu0 0.0
    %1514 = vmatprep.subr.mxu0 0.0
    %1515 = vmatpush1.msra.mxu0 0.0
    %1516 = vmatprep.subr.mxu0 0.0
    %1517 = vmatpush1.msra.mxu0 0.0
    %1518 = vmatprep.subr.mxu0 0.0
    %1519 = vmatpush1.msra.mxu0 0.0
    %1520 = vmatprep.subr.mxu0 0.0
    %1521 = vmatpush1.msra.mxu0 0.0
    %1522 = vmatprep.subr.mxu0 0.0
    %1523 = vmatpush1.msra.mxu0 0.0
    %1524 = vmatprep.subr.mxu0 0.0
    %1525 = vmatpush1.msra.mxu0 0.0
    %1526 = vmatprep.subr.mxu0 0.0
    %1527 = vmatpush1.msra.mxu0 0.0
    %1528 = vmatprep.subr.mxu0 0.0
    %1529 = vmatpush1.msra.mxu0 0.0
    %1530 = vmatprep.subr.mxu0 0.0
    %1531 = vmatpush1.msra.mxu0 0.0
    %1532 = vmatprep.subr.mxu0 0.0
    %1533 = vmatpush1.msra.mxu0 0.0
    %1534 = vmatprep.subr.mxu0 0.0
    %1535 = vmatpush1.msra.mxu0 0.0
    %1536 = vmatprep.subr.mxu0 0.0
    %1537 = vmatpush1.msra.mxu0 0.0
    %1538 = vmatprep.subr.mxu0 0.0
    %1539 = vmatpush1.msra.mxu0 0.0
    %1540 = vmatprep.subr.mxu0 0.0
    %1541 = vmatpush1.msra.mxu0 0.0
    %1542 = vmatprep.subr.mxu0 0.0
    %1543 = vmatpush1.msra.mxu0 0.0
    %1544 = vmatprep.subr.mxu0 0.0
    %1545 = vmatpush1.msra.mxu0 0.0
    %1546 = vmatprep.subr.mxu0 0.0
    %1547 = vmatpush1.msra.mxu0 0.0
    %1548 = vmatprep.subr.mxu0 0.0
    %1549 = vmatpush1.msra.mxu0 0.0
    %1550 = vmatprep.subr.mxu0 0.0
    %1551 = vmatpush1.msra.mxu0 0.0
    %1552 = vmatprep.subr.mxu0 0.0
    %1553 = vmatpush1.msra.mxu0 0.0
    %1554 = vmatprep.subr.mxu0 0.0
    %1555 = vmatpush1.msra.mxu0 0.0
    %1556 = vmatprep.subr.mxu0 0.0
    %1557 = vmatpush1.msra.mxu0 0.0
    %1558 = vmatprep.subr.mxu0 0.0
    %1559 = vmatpush1.msra.mxu0 0.0
    %1560 = vmatprep.subr.mxu0 0.0
    %1561 = vmatpush1.msra.mxu0 0.0
    %1562 = vmatprep.subr.mxu0 0.0
    %1563 = vmatpush1.msra.mxu0 0.0
    %1564 = vmatprep.subr.mxu0 0.0
    %1565 = vmatpush1.msra.mxu0 0.0
    %1566 = vmatprep.subr.mxu0 0.0
    %1567 = vmatpush1.msra.mxu0 0.0
    %1568 = vmatprep.subr.mxu0 0.0
    %1569 = vmatpush1.msra.mxu0 0.0
    %1570 = vmatprep.subr.mxu0 0.0
    %1571 = vmatpush1.msra.mxu0 0.0
    %1572 = vmatprep.mubr.f32.mxu0 0.0
    %1573 = vmatmul.mubr.f32.gmra.mrb[0].mxu0 %v1503
    %v1574 = vpop.f32.mrb[0].mxu0
    %v1575 = vadd.f32 0.0, %v1574
    %v1576 = vpop.f32.mrb[0].mxu0
    %1577 = vmatprep.mubr.f32.mxu0 0.0
    %1578 = vmatmul.mubr.f32.gmra.mrb[0].mxu0 %v1506
    %v1579 = vpop.f32.mrb[0].mxu0
    %v1580 = vadd.f32 0.0, %v1579
    %v1581 = vpop.f32.mrb[0].mxu0
    %1582 = vdwg.mxu0
    %v1584 = vsel %vm187, %v1115, 0
    %v1587 = vsel %vm187, %v1191, 0
    %1589 = vmatprep.subr.mxu0 0.0
    %1590 = vmatpush1.msra.mxu0 %v1499
    %1591 = vmatprep.subr.mxu0 0.0
    %1592 = vmatpush1.msra.mxu0 0.0
    %1593 = vmatprep.subr.mxu0 0.0
    %1594 = vmatpush1.msra.mxu0 0.0
    %1595 = vmatprep.subr.mxu0 0.0
    %1596 = vmatpush1.msra.mxu0 0.0
    %1597 = vmatprep.subr.mxu0 0.0
    %1598 = vmatpush1.msra.mxu0 0.0
    %1599 = vmatprep.subr.mxu0 0.0
    %1600 = vmatpush1.msra.mxu0 0.0
    %1601 = vmatprep.subr.mxu0 0.0
    %1602 = vmatpush1.msra.mxu0 0.0
    %1603 = vmatprep.subr.mxu0 0.0
    %1604 = vmatpush1.msra.mxu0 0.0
    %1605 = vmatprep.subr.mxu0 0.0
    %1606 = vmatpush1.msra.mxu0 0.0
    %1607 = vmatprep.subr.mxu0 0.0
    %1608 = vmatpush1.msra.mxu0 0.0
    %1609 = vmatprep.subr.mxu0 0.0
    %1610 = vmatpush1.msra.mxu0 0.0
    %1611 = vmatprep.subr.mxu0 0.0
    %1612 = vmatpush1.msra.mxu0 0.0
    %1613 = vmatprep.subr.mxu0 0.0
    %1614 = vmatpush1.msra.mxu0 0.0
    %1615 = vmatprep.subr.mxu0 0.0
    %1616 = vmatpush1.msra.mxu0 0.0
    %1617 = vmatprep.subr.mxu0 0.0
    %1618 = vmatpush1.msra.mxu0 0.0
    %1619 = vmatprep.subr.mxu0 0.0
    %1620 = vmatpush1.msra.mxu0 0.0
    %1621 = vmatprep.subr.mxu0 0.0
    %1622 = vmatpush1.msra.mxu0 0.0
    %1623 = vmatprep.subr.mxu0 0.0
    %1624 = vmatpush1.msra.mxu0 0.0
    %1625 = vmatprep.subr.mxu0 0.0
    %1626 = vmatpush1.msra.mxu0 0.0
    %1627 = vmatprep.subr.mxu0 0.0
    %1628 = vmatpush1.msra.mxu0 0.0
    %1629 = vmatprep.subr.mxu0 0.0
    %1630 = vmatpush1.msra.mxu0 0.0
    %1631 = vmatprep.subr.mxu0 0.0
    %1632 = vmatpush1.msra.mxu0 0.0
    %1633 = vmatprep.subr.mxu0 0.0
    %1634 = vmatpush1.msra.mxu0 0.0
    %1635 = vmatprep.subr.mxu0 0.0
    %1636 = vmatpush1.msra.mxu0 0.0
    %1637 = vmatprep.subr.mxu0 0.0
    %1638 = vmatpush1.msra.mxu0 0.0
    %1639 = vmatprep.subr.mxu0 0.0
    %1640 = vmatpush1.msra.mxu0 0.0
    %1641 = vmatprep.subr.mxu0 0.0
    %1642 = vmatpush1.msra.mxu0 0.0
    %1643 = vmatprep.subr.mxu0 0.0
    %1644 = vmatpush1.msra.mxu0 0.0
    %1645 = vmatprep.subr.mxu0 0.0
    %1646 = vmatpush1.msra.mxu0 0.0
    %1647 = vmatprep.subr.mxu0 0.0
    %1648 = vmatpush1.msra.mxu0 0.0
    %1649 = vmatprep.subr.mxu0 0.0
    %1650 = vmatpush1.msra.mxu0 0.0
    %1651 = vmatprep.subr.mxu0 0.0
    %1652 = vmatpush1.msra.mxu0 0.0
    %1653 = vmatprep.mubr.f32.mxu0 0.0
    %1654 = vmatmul.mubr.f32.gmra.mrb[0].mxu0 %v1584
    %v1655 = vpop.f32.mrb[0].mxu0
    %v1656 = vadd.f32 0.0, %v1655
    %v1657 = vpop.f32.mrb[0].mxu0
    %1658 = vmatprep.mubr.f32.mxu0 0.0
    %1659 = vmatmul.mubr.f32.gmra.mrb[0].mxu0 %v1587
    %v1660 = vpop.f32.mrb[0].mxu0
    %v1661 = vadd.f32 0.0, %v1660
    %v1662 = vpop.f32.mrb[0].mxu0
    %1663 = vdwg.mxu0
    %v1665 = vsel %vm187, %v1267, 0
    %v1668 = vsel %vm187, %v1343, 0
    %1670 = vmatprep.subr.mxu0 0.0
    %1671 = vmatpush1.msra.mxu0 %v1500
    %1672 = vmatprep.subr.mxu0 0.0
    %1673 = vmatpush1.msra.mxu0 0.0
    %1674 = vmatprep.subr.mxu0 0.0
    %1675 = vmatpush1.msra.mxu0 0.0
    %1676 = vmatprep.subr.mxu0 0.0
    %1677 = vmatpush1.msra.mxu0 0.0
    %1678 = vmatprep.subr.mxu0 0.0
    %1679 = vmatpush1.msra.mxu0 0.0
    %1680 = vmatprep.subr.mxu0 0.0
    %1681 = vmatpush1.msra.mxu0 0.0
    %1682 = vmatprep.subr.mxu0 0.0
    %1683 = vmatpush1.msra.mxu0 0.0
    %1684 = vmatprep.subr.mxu0 0.0
    %1685 = vmatpush1.msra.mxu0 0.0
    %1686 = vmatprep.subr.mxu0 0.0
    %1687 = vmatpush1.msra.mxu0 0.0
    %1688 = vmatprep.subr.mxu0 0.0
    %1689 = vmatpush1.msra.mxu0 0.0
    %1690 = vmatprep.subr.mxu0 0.0
    %1691 = vmatpush1.msra.mxu0 0.0
    %1692 = vmatprep.subr.mxu0 0.0
    %1693 = vmatpush1.msra.mxu0 0.0
    %1694 = vmatprep.subr.mxu0 0.0
    %1695 = vmatpush1.msra.mxu0 0.0
    %1696 = vmatprep.subr.mxu0 0.0
    %1697 = vmatpush1.msra.mxu0 0.0
    %1698 = vmatprep.subr.mxu0 0.0
    %1699 = vmatpush1.msra.mxu0 0.0
    %1700 = vmatprep.subr.mxu0 0.0
    %1701 = vmatpush1.msra.mxu0 0.0
    %1702 = vmatprep.subr.mxu0 0.0
    %1703 = vmatpush1.msra.mxu0 0.0
    %1704 = vmatprep.subr.mxu0 0.0
    %1705 = vmatpush1.msra.mxu0 0.0
    %1706 = vmatprep.subr.mxu0 0.0
    %1707 = vmatpush1.msra.mxu0 0.0
    %1708 = vmatprep.subr.mxu0 0.0
    %1709 = vmatpush1.msra.mxu0 0.0
    %1710 = vmatprep.subr.mxu0 0.0
    %1711 = vmatpush1.msra.mxu0 0.0
    %1712 = vmatprep.subr.mxu0 0.0
    %1713 = vmatpush1.msra.mxu0 0.0
    %1714 = vmatprep.subr.mxu0 0.0
    %1715 = vmatpush1.msra.mxu0 0.0
    %1716 = vmatprep.subr.mxu0 0.0
    %1717 = vmatpush1.msra.mxu0 0.0
    %1718 = vmatprep.subr.mxu0 0.0
    %1719 = vmatpush1.msra.mxu0 0.0
    %1720 = vmatprep.subr.mxu0 0.0
    %1721 = vmatpush1.msra.mxu0 0.0
    %1722 = vmatprep.subr.mxu0 0.0
    %1723 = vmatpush1.msra.mxu0 0.0
    %1724 = vmatprep.subr.mxu0 0.0
    %1725 = vmatpush1.msra.mxu0 0.0
    %1726 = vmatprep.subr.mxu0 0.0
    %1727 = vmatpush1.msra.mxu0 0.0
    %1728 = vmatprep.subr.mxu0 0.0
    %1729 = vmatpush1.msra.mxu0 0.0
    %1730 = vmatprep.subr.mxu0 0.0
    %1731 = vmatpush1.msra.mxu0 0.0
    %1732 = vmatprep.subr.mxu0 0.0
    %1733 = vmatpush1.msra.mxu0 0.0
    %1734 = vmatprep.mubr.f32.mxu0 0.0
    %1735 = vmatmul.mubr.f32.gmra.mrb[0].mxu0 %v1665
    %v1736 = vpop.f32.mrb[0].mxu0
    %v1737 = vadd.f32 0.0, %v1736
    %v1738 = vpop.f32.mrb[0].mxu0
    %1739 = vmatprep.mubr.f32.mxu0 0.0
    %1740 = vmatmul.mubr.f32.gmra.mrb[0].mxu0 %v1668
    %v1741 = vpop.f32.mrb[0].mxu0
    %v1742 = vadd.f32 0.0, %v1741
    %v1743 = vpop.f32.mrb[0].mxu0
    %1744 = vdwg.mxu0
    %v1746 = vsel %vm187, %v1419, 0
    %v1749 = vsel %vm187, %v1495, 0
    %1751 = vmatprep.subr.mxu0 0.0
    %1752 = vmatpush1.msra.mxu0 %v1501
    %1753 = vmatprep.subr.mxu0 0.0
    %1754 = vmatpush1.msra.mxu0 0.0
    %1755 = vmatprep.subr.mxu0 0.0
    %1756 = vmatpush1.msra.mxu0 0.0
    %1757 = vmatprep.subr.mxu0 0.0
    %1758 = vmatpush1.msra.mxu0 0.0
    %1759 = vmatprep.subr.mxu0 0.0
    %1760 = vmatpush1.msra.mxu0 0.0
    %1761 = vmatprep.subr.mxu0 0.0
    %1762 = vmatpush1.msra.mxu0 0.0
    %1763 = vmatprep.subr.mxu0 0.0
    %1764 = vmatpush1.msra.mxu0 0.0
    %1765 = vmatprep.subr.mxu0 0.0
    %1766 = vmatpush1.msra.mxu0 0.0
    %1767 = vmatprep.subr.mxu0 0.0
    %1768 = vmatpush1.msra.mxu0 0.0
    %1769 = vmatprep.subr.mxu0 0.0
    %1770 = vmatpush1.msra.mxu0 0.0
    %1771 = vmatprep.subr.mxu0 0.0
    %1772 = vmatpush1.msra.mxu0 0.0
    %1773 = vmatprep.subr.mxu0 0.0
    %1774 = vmatpush1.msra.mxu0 0.0
    %1775 = vmatprep.subr.mxu0 0.0
    %1776 = vmatpush1.msra.mxu0 0.0
    %1777 = vmatprep.subr.mxu0 0.0
    %1778 = vmatpush1.msra.mxu0 0.0
    %1779 = vmatprep.subr.mxu0 0.0
    %1780 = vmatpush1.msra.mxu0 0.0
    %1781 = vmatprep.subr.mxu0 0.0
    %1782 = vmatpush1.msra.mxu0 0.0
    %1783 = vmatprep.subr.mxu0 0.0
    %1784 = vmatpush1.msra.mxu0 0.0
    %1785 = vmatprep.subr.mxu0 0.0
    %1786 = vmatpush1.msra.mxu0 0.0
    %1787 = vmatprep.subr.mxu0 0.0
    %1788 = vmatpush1.msra.mxu0 0.0
    %1789 = vmatprep.subr.mxu0 0.0
    %1790 = vmatpush1.msra.mxu0 0.0
    %1791 = vmatprep.subr.mxu0 0.0
    %1792 = vmatpush1.msra.mxu0 0.0
    %1793 = vmatprep.subr.mxu0 0.0
    %1794 = vmatpush1.msra.mxu0 0.0
    %1795 = vmatprep.subr.mxu0 0.0
    %1796 = vmatpush1.msra.mxu0 0.0
    %1797 = vmatprep.subr.mxu0 0.0
    %1798 = vmatpush1.msra.mxu0 0.0
    %1799 = vmatprep.subr.mxu0 0.0
    %1800 = vmatpush1.msra.mxu0 0.0
    %1801 = vmatprep.subr.mxu0 0.0
    %1802 = vmatpush1.msra.mxu0 0.0
    %1803 = vmatprep.subr.mxu0 0.0
    %1804 = vmatpush1.msra.mxu0 0.0
    %1805 = vmatprep.subr.mxu0 0.0
    %1806 = vmatpush1.msra.mxu0 0.0
    %1807 = vmatprep.subr.mxu0 0.0
    %1808 = vmatpush1.msra.mxu0 0.0
    %1809 = vmatprep.subr.mxu0 0.0
    %1810 = vmatpush1.msra.mxu0 0.0
    %1811 = vmatprep.subr.mxu0 0.0
    %1812 = vmatpush1.msra.mxu0 0.0
    %1813 = vmatprep.subr.mxu0 0.0
    %1814 = vmatpush1.msra.mxu0 0.0
    %1815 = vmatprep.mubr.f32.mxu0 0.0
    %1816 = vmatmul.mubr.f32.gmra.mrb[0].mxu0 %v1746
    %v1817 = vpop.f32.mrb[0].mxu0
    %v1818 = vadd.f32 0.0, %v1817
    %v1819 = vpop.f32.mrb[0].mxu0
    %1820 = vmatprep.mubr.f32.mxu0 0.0
    %1821 = vmatmul.mubr.f32.gmra.mrb[0].mxu0 %v1749
    %v1822 = vpop.f32.mrb[0].mxu0
    %v1823 = vadd.f32 0.0, %v1822
    %v1824 = vpop.f32.mrb[0].mxu0
    %1825 = vdwg.mxu0
    %v1826 = vadd.f32 %v1575, %v1656
    %v1827 = vadd.f32 %v1826, %v1737
    %v1828 = vadd.f32 %v1827, %v1818
    %v1829 = vadd.f32 %v1580, %v1661
    %v1830 = vadd.f32 %v1829, %v1742
    %v1831 = vadd.f32 %v1830, %v1823
    %v1832 = vld [vmem:[%s4] sm:$0x1]
    %v1834 = vlaneseq
    %v1835 = vshrl.u32 %v1834, 7
    %v1836 = vsub.s32 0, %v1835
    %v1837 = vrot.slane %v1832, %v1836
    %v1839 = vadd.f32 %v1828, %v1837
    %v1840 = vadd.f32 %v1831, %v1837
    %1841 = vst [vmem:[#allocation8] sm:$0xff] %v1839
    %1842 = vst [vmem:[#allocation8 + $0x8] sm:$0xff] %v1840
    // Predicated region
    $region34: #{tpu_custom_call.1} parent=1 // pred_check
      _
    $region35: #{tpu_custom_call.1} parent=1 // pred_check_branch
      %1844 = sbr.rel (0) target = $region37
    $region36: #{tpu_custom_call.1} parent=1 // pred_region
      %s1846 = ssub.s32 256, 256
      %1847 = vsyncadd [#allocation4], %s1846
      %s1848 = sshll.u32 [#allocation8], 4
      %s1849 = int_to_ptr.vmem [resolvable:$true] %s1848
      %1854 = dma.vmem_to_hbm [thread:$0]  %s1849, 256, %s5, [#allocation4], 128, 128, 8
    $region37: #{tpu_custom_call.1} parent=1 // pred_fallthru
      _
    // Predicated region
    $region38: #{tpu_custom_call.1} parent=1 // pred_check
      _
    $region39: #{tpu_custom_call.1} parent=1 // pred_check_branch
      %1856 = sbr.rel (0) target = $region41
    $region40: #{tpu_custom_call.1} parent=1 // pred_region
      %1857 = dma.done [#allocation4], 256
    $region41: #{tpu_custom_call.1} parent=1 // pred_fallthru
      _
    %1858 = vsyncpa [#allocation3], 1
    %1859 = vsyncpa [#allocation6], 1
    %1860 = vsyncpa [#allocation4], 1

</llo_original>
